<compile_context>
chip_gen: v7x
topology: tpu7x:2x2x1
jax: 0.10.0
libtpu: 0.0.40
codegen_flags: <defaults>
</compile_context>

<pallas_src>
import functools

import jax
import jax.numpy as jnp
from jax.experimental import pallas as pl
from jax.experimental.pallas import tpu as pltpu


def _round_up(x, m):
    return ((x + m - 1) // m) * m


def _ffn_block(x, w1, w2):
    """relu(x @ w1) @ w2 + x for one row tile; bf16 MXU inputs, f32 accumulate."""
    h = jnp.dot(x.astype(w1.dtype), w1, preferred_element_type=jnp.float32)
    h = jnp.maximum(h, 0.0)                       # ReLU in f32 on the VPU
    y = jnp.dot(h.astype(w2.dtype), w2, preferred_element_type=jnp.float32)
    return x.astype(jnp.float32) + y              # residual add in f32


def _ffn_single_kernel(x_ref, w1_ref, w2_ref, o_ref):
    o_ref[...] = _ffn_block(x_ref[...], w1_ref[...], w2_ref[...]).astype(o_ref.dtype)


def _ffn_pair_kernel(img_ref, txt_ref, w1_ref, w2_ref, img_o_ref, txt_o_ref):
    w1 = w1_ref[...]
    w2 = w2_ref[...]
    img_o_ref[...] = _ffn_block(img_ref[...], w1, w2).astype(img_o_ref.dtype)
    txt_o_ref[...] = _ffn_block(txt_ref[...], w1, w2).astype(txt_o_ref.dtype)


def _weight_bytes(w1, w2):
    return (w1.size * jnp.dtype(w1.dtype).itemsize
            + w2.size * jnp.dtype(w2.dtype).itemsize)


def _compiler_params(act_block_bytes, w_bytes):
    # act_block_bytes = (in + out) activation bytes for ONE grid step.
    # Double-buffered activations + (possibly double-buffered) resident weights
    # + headroom for Mosaic internal scratch / in-kernel intermediates.
    vmem = int(1.5 * (2 * act_block_bytes + 2 * w_bytes)) + (8 << 20)
    return pltpu.CompilerParams(
        dimension_semantics=("parallel",),   # row tiles shard across v7x TCs
        vmem_limit_bytes=vmem,
    )


def ffn_residual(x, w1, w2, *, tm=1024):
    """out = x + relu(x @ w1) @ w2, row-tiled (single-stream version)."""
    n, d = x.shape
    dh = w1.shape[1]
    assert n > 0 and w1.shape == (d, dh) and w2.shape == (dh, d)
    # NOTE: d / dh that are not 128-multiples still compile (feature dims are
    # full-extent blocks) but fall into masked partial stores; keep them dense.

    g = max(2, pl.cdiv(n, tm))                     # >=2 tiles for megacore
    tm_eff = _round_up(pl.cdiv(n, g), 8)           # balanced, 8-aligned tiles
    g = pl.cdiv(n, tm_eff)

    itemsize = jnp.dtype(x.dtype).itemsize
    w_bytes = _weight_bytes(w1, w2)
    cost = pl.CostEstimate(
        flops=4 * n * d * dh,
        transcendentals=0,
        bytes_accessed=2 * n * d * itemsize + w_bytes,
    )
    return pl.pallas_call(
        _ffn_single_kernel,
        out_shape=jax.ShapeDtypeStruct((n, d), x.dtype),
        grid_spec=pltpu.PrefetchScalarGridSpec(
            num_scalar_prefetch=0,
            grid=(g,),
            in_specs=[
                pl.BlockSpec((tm_eff, d), lambda i: (i, 0)),   # activation rows
                pl.BlockSpec((d, dh), lambda i: (0, 0)),       # W1 (resident)
                pl.BlockSpec((dh, d), lambda i: (0, 0)),       # W2 (resident)
            ],
            out_specs=pl.BlockSpec((tm_eff, d), lambda i: (i, 0)),
        ),
        compiler_params=_compiler_params(2 * tm_eff * d * itemsize, w_bytes),
        cost_estimate=cost,
    )(x, w1, w2)


def ffn_residual_pair(img, text, w1, w2, *, tm=1024):
    """Fused FCBS core: (img + ffn(img), text + ffn(text)) in ONE pallas_call.

    Each grid step processes one img row tile and one text row tile against the
    same resident weights -> one launch / one weight DMA for both streams, and
    no concat/split copies (the FFN + residual is purely row-wise).
    """
    n_i, d = img.shape
    n_t, d_t = text.shape
    dh = w1.shape[1]
    assert d == d_t and w1.shape == (d, dh) and w2.shape == (dh, d)
    assert n_i > 0 and n_t > 0
    assert img.dtype == text.dtype

    g = max(2, pl.cdiv(max(n_i, n_t), tm))         # >=2 tiles for v7x megacore
    tm_i = _round_up(pl.cdiv(n_i, g), 8)           # balanced per-stream tiles
    tm_t = _round_up(pl.cdiv(n_t, g), 8)
    # After the 8-row round-up a stream may need fewer than g blocks; clamp its
    # block index so trailing steps just recompute (and idempotently rewrite)
    # its last tile instead of indexing past the array.
    g_i = pl.cdiv(n_i, tm_i)
    g_t = pl.cdiv(n_t, tm_t)

    itemsize = jnp.dtype(img.dtype).itemsize
    w_bytes = _weight_bytes(w1, w2)
    cost = pl.CostEstimate(
        flops=4 * (n_i + n_t) * d * dh,
        transcendentals=0,
        bytes_accessed=2 * (n_i + n_t) * d * itemsize + w_bytes,
    )
    img_out, txt_out = pl.pallas_call(
        _ffn_pair_kernel,
        out_shape=(jax.ShapeDtypeStruct((n_i, d), img.dtype),
                   jax.ShapeDtypeStruct((n_t, d), text.dtype)),
        grid_spec=pltpu.PrefetchScalarGridSpec(
            num_scalar_prefetch=0,
            grid=(g,),
            in_specs=[
                pl.BlockSpec((tm_i, d), lambda i: (jnp.minimum(i, g_i - 1), 0)),
                pl.BlockSpec((tm_t, d), lambda i: (jnp.minimum(i, g_t - 1), 0)),
                pl.BlockSpec((d, dh), lambda i: (0, 0)),   # W1 (resident)
                pl.BlockSpec((dh, d), lambda i: (0, 0)),   # W2 (resident)
            ],
            out_specs=(
                pl.BlockSpec((tm_i, d), lambda i: (jnp.minimum(i, g_i - 1), 0)),
                pl.BlockSpec((tm_t, d), lambda i: (jnp.minimum(i, g_t - 1), 0)),
            ),
        ),
        compiler_params=_compiler_params(2 * (tm_i + tm_t) * d * itemsize,
                                         w_bytes),
        cost_estimate=cost,
    )(img, text, w1, w2)
    # TODO(synk): for very large d (bf16 W1+W2 approaching v7x's 64 MiB VMEM,
    # e.g. d >= 8192) add a dh/K grid axis so only one weight block is resident
    # per step instead of keeping both full weights in VMEM.
    return img_out, txt_out


class FCBS:
    """JAX/Pallas port of the PyTorch FCBS module (bias-free FFN + residual)."""

    def __init__(self, vis_dim, key, weight_dtype=jnp.bfloat16):
        dh = vis_dim // 4
        k1, k2 = jax.random.split(key)
        bound1 = 1.0 / jnp.sqrt(vis_dim)
        bound2 = 1.0 / jnp.sqrt(dh)
        # Stored pre-transposed (in_features, out_features); bf16 halves the
        # weight HBM/VMEM footprint and runs the MXU at bf16 throughput.
        self.w1 = jax.random.uniform(k1, (vis_dim, dh), jnp.float32,
                                     minval=-bound1, maxval=bound1
                                     ).astype(weight_dtype)
        self.w2 = jax.random.uniform(k2, (dh, vis_dim), jnp.float32,
                                     minval=-bound2, maxval=bound2
                                     ).astype(weight_dtype)
        self.vis_dim = vis_dim

    @functools.partial(jax.jit, static_argnums=0)
    def __call__(self, img_feature, text_feature):
        n_i = img_feature.shape[0]
        n_t = text_feature.shape[0]
        if n_i == 0 or n_t == 0:   # degenerate streams: fall back to per-stream
            img_out = (img_feature if n_i == 0
                       else ffn_residual(img_feature, self.w1, self.w2))
            text_out = (text_feature if n_t == 0
                        else ffn_residual(text_feature, self.w1, self.w2))
            return img_out, text_out
        return ffn_residual_pair(img_feature, text_feature, self.w1, self.w2)


def _reference(img, text, w1, w2):
    w1 = w1.astype(jnp.float32)
    w2 = w2.astype(jnp.float32)
    fusion = jnp.concatenate([img, text], axis=0)
    y = fusion + jnp.maximum(fusion @ w1, 0.0) @ w2
    return y[: img.shape[0]], y[img.shape[0]:]


if __name__ == "__main__":
    key = jax.random.PRNGKey(0)
    k_mod, k_img, k_txt = jax.random.split(key, 3)

    vis_dim = 512              # hidden = vis_dim // 4 = 128 (lane-dense)
    img_l, text_l = 300, 120   # exercises ragged tiles + balanced 2-tile grids

    model = FCBS(vis_dim, k_mod)
    img_feature = jax.random.normal(k_img, (img_l, vis_dim), jnp.float32)
    text_feature = jax.random.normal(k_txt, (text_l, vis_dim), jnp.float32)

    img_out, text_out = model(img_feature, text_feature)
    jax.block_until_ready((img_out, text_out))

    ref_img, ref_text = _reference(img_feature, text_feature, model.w1, model.w2)
    assert img_out.shape == img_feature.shape
    assert text_out.shape == text_feature.shape
    # bf16 matmul inputs with f32 accumulation -> ~1e-2 tolerance vs f32 ref.
    assert jnp.allclose(img_out, ref_img, atol=2e-2, rtol=2e-2)
    assert jnp.allclose(text_out, ref_text, atol=2e-2, rtol=2e-2)

    # Also exercise the single-stream kernel (used as the degenerate fallback).
    single = ffn_residual(text_feature, model.w1, model.w2)
    jax.block_until_ready(single)
    assert jnp.allclose(single, ref_text, atol=2e-2, rtol=2e-2)

    print("KERNEL_OK")
</pallas_src>

<mosaic_0001>
module attributes {stable_mosaic.version = 11 : i64} {
  func.func @_ffn_pair_kernel(%arg0: i32, %arg1: memref<152x512xf32, #tpu.memory_space<vmem>>, %arg2: memref<64x512xf32, #tpu.memory_space<vmem>>, %arg3: memref<512x128xbf16, #tpu.memory_space<vmem>>, %arg4: memref<128x512xbf16, #tpu.memory_space<vmem>>, %arg5: memref<152x512xf32, #tpu.memory_space<vmem>>, %arg6: memref<64x512xf32, #tpu.memory_space<vmem>>) attributes {dimension_semantics = [#tpu.dimension_semantics<parallel>], iteration_bounds = array<i64: 2>, scalar_prefetch = 0 : i64, scratch_operands = 0 : i64, tpu.core_type = #tpu.core_type<tc>, window_params = [{transform_indices = @transform_0, window_bounds = array<i64: 152, 512>}, {transform_indices = @transform_1, window_bounds = array<i64: 64, 512>}, {pipeline_mode = #tpu.pipeline_mode<synchronous>, transform_indices = @transform_2, window_bounds = array<i64: 512, 128>}, {pipeline_mode = #tpu.pipeline_mode<synchronous>, transform_indices = @transform_3, window_bounds = array<i64: 128, 512>}, {transform_indices = @transform_4, window_bounds = array<i64: 152, 512>}, {transform_indices = @transform_5, window_bounds = array<i64: 64, 512>}]} {
    %c0 = arith.constant 0 : index
    %c0_0 = arith.constant 0 : index
    %0 = vector.load %arg3[%c0, %c0_0] : memref<512x128xbf16, #tpu.memory_space<vmem>>, vector<512x128xbf16>
    %c0_1 = arith.constant 0 : index
    %c0_2 = arith.constant 0 : index
    %1 = vector.load %arg4[%c0_1, %c0_2] : memref<128x512xbf16, #tpu.memory_space<vmem>>, vector<128x512xbf16>
    %c0_3 = arith.constant 0 : index
    %c0_4 = arith.constant 0 : index
    %2 = vector.load %arg1[%c0_3, %c0_4] : memref<152x512xf32, #tpu.memory_space<vmem>>, vector<152x512xf32>
    %3 = arith.truncf %2 : vector<152x512xf32> to vector<152x512xbf16>
    %cst = arith.constant dense<0.000000e+00> : vector<152x128xf32>
    %4 = tpu.matmul %3, %0, %cst {dimension_numbers = #tpu.dot_dimension_numbers<[1], [0], [0], [1], [0, 0, 1, 1], [], []>} : vector<152x512xbf16>, vector<512x128xbf16>, vector<152x128xf32> -> vector<152x128xf32>
    %cst_5 = arith.constant 0.000000e+00 : f32
    %5 = vector.broadcast %cst_5 : f32 to vector<152x128xf32>
    %6 = arith.maximumf %4, %5 : vector<152x128xf32>
    %7 = arith.truncf %6 : vector<152x128xf32> to vector<152x128xbf16>
    %cst_6 = arith.constant dense<0.000000e+00> : vector<152x512xf32>
    %8 = tpu.matmul %7, %1, %cst_6 {dimension_numbers = #tpu.dot_dimension_numbers<[1], [0], [0], [1], [0, 0, 1, 1], [], []>} : vector<152x128xbf16>, vector<128x512xbf16>, vector<152x512xf32> -> vector<152x512xf32>
    %9 = arith.addf %2, %8 : vector<152x512xf32>
    %c0_7 = arith.constant 0 : index
    %c0_8 = arith.constant 0 : index
    %10 = vector.load %arg5[%c0_7, %c0_8] : memref<152x512xf32, #tpu.memory_space<vmem>>, vector<152x512xf32>
    tpu.vector_store %arg5[%c0_7, %c0_8], %9 {strides = array<i32>} : memref<152x512xf32, #tpu.memory_space<vmem>>, vector<152x512xf32>,
    %c0_9 = arith.constant 0 : index
    %c0_10 = arith.constant 0 : index
    %11 = vector.load %arg2[%c0_9, %c0_10] : memref<64x512xf32, #tpu.memory_space<vmem>>, vector<64x512xf32>
    %12 = arith.truncf %11 : vector<64x512xf32> to vector<64x512xbf16>
    %cst_11 = arith.constant dense<0.000000e+00> : vector<64x128xf32>
    %13 = tpu.matmul %12, %0, %cst_11 {dimension_numbers = #tpu.dot_dimension_numbers<[1], [0], [0], [1], [0, 0, 1, 1], [], []>} : vector<64x512xbf16>, vector<512x128xbf16>, vector<64x128xf32> -> vector<64x128xf32>
    %cst_12 = arith.constant 0.000000e+00 : f32
    %14 = vector.broadcast %cst_12 : f32 to vector<64x128xf32>
    %15 = arith.maximumf %13, %14 : vector<64x128xf32>
    %16 = arith.truncf %15 : vector<64x128xf32> to vector<64x128xbf16>
    %cst_13 = arith.constant dense<0.000000e+00> : vector<64x512xf32>
    %17 = tpu.matmul %16, %1, %cst_13 {dimension_numbers = #tpu.dot_dimension_numbers<[1], [0], [0], [1], [0, 0, 1, 1], [], []>} : vector<64x128xbf16>, vector<128x512xbf16>, vector<64x512xf32> -> vector<64x512xf32>
    %18 = arith.addf %11, %17 : vector<64x512xf32>
    %c0_14 = arith.constant 0 : index
    %c0_15 = arith.constant 0 : index
    %19 = vector.load %arg6[%c0_14, %c0_15] : memref<64x512xf32, #tpu.memory_space<vmem>>, vector<64x512xf32>
    tpu.vector_store %arg6[%c0_14, %c0_15], %18 {strides = array<i32>} : memref<64x512xf32, #tpu.memory_space<vmem>>, vector<64x512xf32>,
    return
  }
  func.func @transform_0(%arg0: i32) -> (i32, i32) {
    %c1_i32 = arith.constant 1 : i32
    %0 = arith.minsi %arg0, %c1_i32 : i32
    %c0_i32 = arith.constant 0 : i32
    %c0_i32_0 = arith.constant 0 : i32
    return %0, %c0_i32 : i32, i32
  }
  func.func @transform_1(%arg0: i32) -> (i32, i32) {
    %c1_i32 = arith.constant 1 : i32
    %0 = arith.minsi %arg0, %c1_i32 : i32
    %c0_i32 = arith.constant 0 : i32
    %c0_i32_0 = arith.constant 0 : i32
    return %0, %c0_i32 : i32, i32
  }
  func.func @transform_2(%arg0: i32) -> (i32, i32) {
    %c0_i32 = arith.constant 0 : i32
    %c0_i32_0 = arith.constant 0 : i32
    %c0_i32_1 = arith.constant 0 : i32
    return %c0_i32, %c0_i32_0 : i32, i32
  }
  func.func @transform_3(%arg0: i32) -> (i32, i32) {
    %c0_i32 = arith.constant 0 : i32
    %c0_i32_0 = arith.constant 0 : i32
    %c0_i32_1 = arith.constant 0 : i32
    return %c0_i32, %c0_i32_0 : i32, i32
  }
  func.func @transform_4(%arg0: i32) -> (i32, i32) {
    %c1_i32 = arith.constant 1 : i32
    %0 = arith.minsi %arg0, %c1_i32 : i32
    %c0_i32 = arith.constant 0 : i32
    %c0_i32_0 = arith.constant 0 : i32
    return %0, %c0_i32 : i32, i32
  }
  func.func @transform_5(%arg0: i32) -> (i32, i32) {
    %c1_i32 = arith.constant 1 : i32
    %0 = arith.minsi %arg0, %c1_i32 : i32
    %c0_i32 = arith.constant 0 : i32
    %c0_i32_0 = arith.constant 0 : i32
    return %0, %c0_i32 : i32, i32
  }
}

</mosaic_0001>

<llo_original>
// kernel: a_call__.1
$region0: #{a_call__.1}
  #allocation0 [shape = 'u32[]', space=smem, size = 0x4, offset = 0x4, fixed_abs, tag = 'smem constant byte address 0x4 - core index']
  #allocation1 [shape = 'u32[144,128]{1,0:T(1,128)}', space=vmem, size = 0x12000, scoped, tag = 'internal scratch']
  %s0 = inlined_call_operand.hbm [shape: f32[300,512], index: 0, kind: input, shape index: {}]
  %s1 = inlined_call_operand.vmem [shape: f32[120,512], index: 1, kind: input, shape index: {}]
  %s2 = inlined_call_operand.hbm [shape: bf16[512,128], index: 2, kind: input, shape index: {}]
  %s3 = inlined_call_operand.vmem [shape: bf16[128,512], index: 3, kind: input, shape index: {}]
  %s4 = inlined_call_operand.hbm [shape: f32[300,512], index: 4, kind: output, shape index: {0}]
  %s5 = inlined_call_operand.hbm [shape: f32[120,512], index: 5, kind: output, shape index: {1}]
  %6 = xla_tuple %s4, %s5
  %s7 = sld [smem:[#allocation0]]
  $region65: #{a_call__.1} parent=0
    _
  %s9 = ssub.s32 1, %s7
  %s10 = scalar_select 0, %s9, %s7
  $region1: #{a_call__.1} parent=0
    #allocation2 [shape = 'u8[622592]{0}', space=vmem, size = 0x98000, scoped, tag = 'input window, operand 0']
    #allocation3 [shape = 's32[2]{0}', space=sflag, size = 0x8, scoped, tag = 'scoped memory for a_call__.1']
    #allocation4 [shape = 's32[2]{0}', space=sflag, size = 0x8, scoped, tag = 'scoped memory for a_call__.1']
    #allocation5 [shape = 'u8[131072]{0}', space=vmem, size = 0x20000, scoped, tag = 'input window, operand 2, single buffered']
    #allocation6 [shape = 's32[1]{0}', space=sflag, size = 0x4, scoped, tag = 'scoped memory for a_call__.1']
    #allocation7 [shape = 'u8[622592]{0}', space=vmem, size = 0x98000, scoped, tag = 'output window, operand 0']
    #allocation8 [shape = 'u8[262144]{0}', space=vmem, size = 0x40000, scoped, tag = 'output window, operand 1']
    #allocation9 [shape = 's32[2]{0}', space=sflag, size = 0x8, scoped, tag = 'scoped memory for a_call__.1']
    %11 = vsyncpa [#allocation3], 0
    %s12 = scalar_lea.sflag [#allocation3], 1
    %13 = vsyncpa %s12, 0
    %14 = vsyncpa [#allocation6], 0
    %15 = vsyncpa [#allocation4], 0
    %s16 = scalar_lea.sflag [#allocation4], 1
    %17 = vsyncpa %s16, 0
    %18 = vsyncpa [#allocation9], 0
    %s19 = scalar_lea.sflag [#allocation9], 1
    %20 = vsyncpa %s19, 0
    loop: start=0, step=1, limit=4
    $region2: #{a_call__.1} parent=1 // loop_pre_header
      _
    $region3: #{a_call__.1} parent=1 // loop_header
      %s22 = sphi 0, %s26
      %p23 = scmp.ge.s32.totalorder %s22, 4
      %s36 = sphi 0, %s38
      %s39 = sphi 0, %s36
      %s40 = sphi 0, %s39
      %s56 = sphi 0, %s40
      %s66 = sphi 0, %s68
      %s69 = sphi 0, %s66
      %s70 = sphi 0, %s69
      %s86 = sphi 0, %s70
      %s90 = sphi 0, %s90
      %s92 = sphi 0, %s90
      %s93 = sphi 0, %s92
      %s107 = sphi 0, %s93
      %s111 = sphi 0, %s111
      %s113 = sphi 0, %s111
      %s114 = sphi 0, %s113
      %s128 = sphi 0, %s114
      %s138 = sphi 0, %s140
      %s141 = sphi 0, %s138
      %s142 = sphi 0, %s141
      %s158 = sphi 0, %s142
      %s168 = sphi 0, %s170
      %s171 = sphi 0, %s168
      %s172 = sphi 0, %s171
      %s188 = sphi 0, %s172
    $region4: #{a_call__.1} parent=1 // loop_header_branch
      %25 = sbr.rel (%p23) target = $region8
    $region5: #{a_call__.1} parent=1 // loop_body
      %s27 = ssub.s32 %s22, 1
      %s28 = ssub.s32 %s22, 2
      %s29 = sadd.s32 %s22, 1
      %p30 = scmp.lt.s32.totalorder %s22, 1
      %s31 = scalar_select %p30, %s22, 1
      %p32 = scmp.lt.s32.totalorder %s29, 1
      %s33 = scalar_select %p32, %s29, 1
      %s34 = ssub.s32 %s31, %s33
      %p35 = scmp.eq.s32.totalorder %s34, 0
      %s37 = sadd.s32 %s36, 1
      %s38 = scalar_select %p35, %s36, %s37
      %p41 = pneg %p35
      %p42 = scmp.eq.s32.totalorder %s22, 1
      %p43 = por %p41, %p42
      %p44 = scmp.ne.s32.totalorder %s36, %s39
      %p45 = scmp.eq.s32.totalorder %s22, 0
      %p46 = por %p44, %p45
      %p47 = scmp.ne.s32.totalorder %s36, %s39
      %p48 = scmp.eq.s32.totalorder %s27, 1
      %p49 = por %p47, %p48
      %p50 = scmp.ne.s32.totalorder %s39, %s40
      %p51 = scmp.eq.s32.totalorder %s27, 0
      %p52 = por %p50, %p51
      %p53 = scmp.ne.s32.totalorder %s39, %s40
      %p54 = scmp.eq.s32.totalorder %s28, 1
      %p55 = por %p53, %p54
      %p57 = scmp.ne.s32.totalorder %s40, %s56
      %p58 = scmp.eq.s32.totalorder %s28, 0
      %p59 = por %p57, %p58
      %p60 = scmp.lt.s32.totalorder %s22, 1
      %s61 = scalar_select %p60, %s22, 1
      %p62 = scmp.lt.s32.totalorder %s29, 1
      %s63 = scalar_select %p62, %s29, 1
      %s64 = ssub.s32 %s61, %s63
      %p65 = scmp.eq.s32.totalorder %s64, 0
      %s67 = sadd.s32 %s66, 1
      %s68 = scalar_select %p65, %s66, %s67
      %p71 = pneg %p65
      %p72 = scmp.eq.s32.totalorder %s22, 1
      %p73 = por %p71, %p72
      %p74 = scmp.ne.s32.totalorder %s66, %s69
      %p75 = scmp.eq.s32.totalorder %s22, 0
      %p76 = por %p74, %p75
      %p77 = scmp.ne.s32.totalorder %s66, %s69
      %p78 = scmp.eq.s32.totalorder %s27, 1
      %p79 = por %p77, %p78
      %p80 = scmp.ne.s32.totalorder %s69, %s70
      %p81 = scmp.eq.s32.totalorder %s27, 0
      %p82 = por %p80, %p81
      %p83 = scmp.ne.s32.totalorder %s69, %s70
      %p84 = scmp.eq.s32.totalorder %s28, 1
      %p85 = por %p83, %p84
      %p87 = scmp.ne.s32.totalorder %s70, %s86
      %p88 = scmp.eq.s32.totalorder %s28, 0
      %p89 = por %p87, %p88
      %s91 = sadd.s32 %s90, 1
      %p94 = scmp.eq.s32.totalorder %s22, 1
      %p95 = scmp.ne.s32.totalorder %s90, %s92
      %p96 = scmp.eq.s32.totalorder %s22, 0
      %p97 = por %p95, %p96
      %p98 = scmp.ne.s32.totalorder %s90, %s92
      %p99 = scmp.eq.s32.totalorder %s27, 1
      %p100 = por %p98, %p99
      %p101 = scmp.ne.s32.totalorder %s92, %s93
      %p102 = scmp.eq.s32.totalorder %s27, 0
      %p103 = por %p101, %p102
      %p104 = scmp.ne.s32.totalorder %s92, %s93
      %p105 = scmp.eq.s32.totalorder %s28, 1
      %p106 = por %p104, %p105
      %p108 = scmp.ne.s32.totalorder %s93, %s107
      %p109 = scmp.eq.s32.totalorder %s28, 0
      %p110 = por %p108, %p109
      %s112 = sadd.s32 %s111, 1
      %p115 = scmp.eq.s32.totalorder %s22, 1
      %p116 = scmp.ne.s32.totalorder %s111, %s113
      %p117 = scmp.eq.s32.totalorder %s22, 0
      %p118 = por %p116, %p117
      %p119 = scmp.ne.s32.totalorder %s111, %s113
      %p120 = scmp.eq.s32.totalorder %s27, 1
      %p121 = por %p119, %p120
      %p122 = scmp.ne.s32.totalorder %s113, %s114
      %p123 = scmp.eq.s32.totalorder %s27, 0
      %p124 = por %p122, %p123
      %p125 = scmp.ne.s32.totalorder %s113, %s114
      %p126 = scmp.eq.s32.totalorder %s28, 1
      %p127 = por %p125, %p126
      %p129 = scmp.ne.s32.totalorder %s114, %s128
      %p130 = scmp.eq.s32.totalorder %s28, 0
      %p131 = por %p129, %p130
      %p132 = scmp.lt.s32.totalorder %s22, 1
      %s133 = scalar_select %p132, %s22, 1
      %p134 = scmp.lt.s32.totalorder %s29, 1
      %s135 = scalar_select %p134, %s29, 1
      %s136 = ssub.s32 %s133, %s135
      %p137 = scmp.eq.s32.totalorder %s136, 0
      %s139 = sadd.s32 %s138, 1
      %s140 = scalar_select %p137, %s138, %s139
      %p143 = pneg %p137
      %p144 = scmp.eq.s32.totalorder %s22, 1
      %p145 = por %p143, %p144
      %p146 = scmp.ne.s32.totalorder %s138, %s141
      %p147 = scmp.eq.s32.totalorder %s22, 0
      %p148 = por %p146, %p147
      %p149 = scmp.ne.s32.totalorder %s138, %s141
      %p150 = scmp.eq.s32.totalorder %s27, 1
      %p151 = por %p149, %p150
      %p152 = scmp.ne.s32.totalorder %s141, %s142
      %p153 = scmp.eq.s32.totalorder %s27, 0
      %p154 = por %p152, %p153
      %p155 = scmp.ne.s32.totalorder %s141, %s142
      %p156 = scmp.eq.s32.totalorder %s28, 1
      %p157 = por %p155, %p156
      %p159 = scmp.ne.s32.totalorder %s142, %s158
      %p160 = scmp.eq.s32.totalorder %s28, 0
      %p161 = por %p159, %p160
      %p162 = scmp.lt.s32.totalorder %s22, 1
      %s163 = scalar_select %p162, %s22, 1
      %p164 = scmp.lt.s32.totalorder %s29, 1
      %s165 = scalar_select %p164, %s29, 1
      %s166 = ssub.s32 %s163, %s165
      %p167 = scmp.eq.s32.totalorder %s166, 0
      %s169 = sadd.s32 %s168, 1
      %s170 = scalar_select %p167, %s168, %s169
      %p173 = pneg %p167
      %p174 = scmp.eq.s32.totalorder %s22, 1
      %p175 = por %p173, %p174
      %p176 = scmp.ne.s32.totalorder %s168, %s171
      %p177 = scmp.eq.s32.totalorder %s22, 0
      %p178 = por %p176, %p177
      %p179 = scmp.ne.s32.totalorder %s168, %s171
      %p180 = scmp.eq.s32.totalorder %s27, 1
      %p181 = por %p179, %p180
      %p182 = scmp.ne.s32.totalorder %s171, %s172
      %p183 = scmp.eq.s32.totalorder %s27, 0
      %p184 = por %p182, %p183
      %p185 = scmp.ne.s32.totalorder %s171, %s172
      %p186 = scmp.eq.s32.totalorder %s28, 1
      %p187 = por %p185, %p186
      %p189 = scmp.ne.s32.totalorder %s172, %s188
      %p190 = scmp.eq.s32.totalorder %s28, 0
      %p191 = por %p189, %p190
      %p192 = scmp.le.s32.totalorder 1, %s22
      %p193 = scmp.lt.s32.totalorder %s22, 3
      %p194 = pnand %p192, %p193
      %p195 = pneg %p194
      // Predicated region
      $region9: #{a_call__.1} parent=5 // pred_check
        _
      $region10: #{a_call__.1} parent=5 // pred_check_branch
        %197 = sbr.rel (%p194) target = $region12
      $region11: #{a_call__.1} parent=5 // pred_region
        %s198 = ssub.s32 %s22, 1
        // Predicated region
        $region13: #{a_call__.1} parent=11 // pred_check
          %p199 = pneg %p103
        $region14: #{a_call__.1} parent=11 // pred_check_branch
          %201 = sbr.rel (%p199) target = $region16
        $region15: #{a_call__.1} parent=11 // pred_region
          %s203 = ssub.s32 4096, 4096
          %204 = vsyncadd [#allocation6], %s203
          %s205 = sshll.u32 [#allocation5], 4
          %s206 = int_to_ptr.vmem [resolvable:$true] %s205
          %211 = dma.hbm_to_vmem [thread:$0]  %s2, 4096, %s206, [#allocation6], 64, 64, 4
        $region16: #{a_call__.1} parent=11 // pred_fallthru
          _
        // Predicated region
        $region17: #{a_call__.1} parent=11 // pred_check
          %p212 = pneg %p124
        $region18: #{a_call__.1} parent=11 // pred_check_branch
          %214 = sbr.rel (%p212) target = $region20
        $region19: #{a_call__.1} parent=11 // pred_region
          _
        $region20: #{a_call__.1} parent=11 // pred_fallthru
          _
      $region12: #{a_call__.1} parent=5 // pred_fallthru
        _
      %p215 = scmp.lt.s32.totalorder %s22, 2
      // Predicated region
      $region21: #{a_call__.1} parent=5 // pred_check
        %p216 = pneg %p215
      $region22: #{a_call__.1} parent=5 // pred_check_branch
        %218 = sbr.rel (%p216) target = $region24
      $region23: #{a_call__.1} parent=5 // pred_region
        // Predicated region
        $region25: #{a_call__.1} parent=23 // pred_check
          %p219 = pneg %p46
        $region26: #{a_call__.1} parent=23 // pred_check_branch
          %221 = sbr.rel (%p219) target = $region28
        $region27: #{a_call__.1} parent=23 // pred_region
          %s222 = sand.u32 %s36, 1
          %s223 = scalar_lea.sflag [#allocation3], %s222
          %s224 = sand.u32 %s36, 1
          %s225 = smul.addr %s224, 608
          %s226 = scalar_lea.vmem [#allocation2], %s225
          %p227 = scmp.lt.s32.totalorder %s22, 1
          %s228 = scalar_select %p227, %s22, 1
          %s229 = smul.u32 19, %s228
          %s231 = ssub.s32 9728, 9728
          %232 = vsyncadd %s223, %s231
          %s233 = smul.addr %s229, 4
          %s234 = smul.addr %s233, 128
          %s235 = scalar_lea.hbm %s0, %s234
          %s236 = sshll.u32 %s226, 4
          %s237 = int_to_ptr.vmem [resolvable:$true] %s236
          %242 = dma.hbm_to_vmem [thread:$0]  %s235, 9728, %s237, %s223, 512, 512, 32
        $region28: #{a_call__.1} parent=23 // pred_fallthru
          _
        // Predicated region
        $region29: #{a_call__.1} parent=23 // pred_check
          %p243 = pneg %p76
        $region30: #{a_call__.1} parent=23 // pred_check_branch
          %245 = sbr.rel (%p243) target = $region32
        $region31: #{a_call__.1} parent=23 // pred_region
          %p246 = scmp.lt.s32.totalorder %s22, 1
          %s247 = scalar_select %p246, %s22, 1
          %s248 = smul.u32 8, %s247
          %s249 = ssub.s32 15, %s248
          %p250 = scmp.lt.s32.totalorder %s249, 8
          %s251 = scalar_select %p250, %s249, 8
          %s252 = smul.u32 128, %s251
          %s253 = smul.u32 %s252, 4
          %p254 = scmp.lt.s32.totalorder %s248, 14
          %s255 = scalar_select %p254, %s248, 14
          %s256 = smul.addr %s255, 4
          %s257 = smul.addr %s256, 8
          %s258 = scalar_lea.vmem %s1, %s257
          %p259 = scmp.lt.s32.totalorder %s22, 1
          %s260 = scalar_select %p259, %s22, 1
          %s261 = smul.u32 8, %s260
          %s262 = ssub.s32 15, %s261
          %p263 = scmp.lt.s32.totalorder %s262, 8
          %s264 = scalar_select %p263, %s262, 8
          %s265 = smul.u32 128, %s264
          %s266 = smul.u32 %s265, 4
        $region32: #{a_call__.1} parent=23 // pred_fallthru
          _
      $region24: #{a_call__.1} parent=5 // pred_fallthru
        _
      %p267 = scmp.le.s32.totalorder 1, %s22
      %p268 = scmp.lt.s32.totalorder %s22, 3
      %p269 = pnand %p267, %p268
      %p270 = pneg %p269
      // Predicated region
      $region33: #{a_call__.1} parent=5 // pred_check
        _
      $region34: #{a_call__.1} parent=5 // pred_check_branch
        %272 = sbr.rel (%p269) target = $region36
      $region35: #{a_call__.1} parent=5 // pred_region
        %s273 = ssub.s32 %s22, 1
        %s274 = sand.u32 %s39, 1
        %s275 = scalar_lea.sflag [#allocation3], %s274
        %s276 = sand.u32 %s39, 1
        %s277 = smul.addr %s276, 608
        %s278 = scalar_lea.vmem [#allocation2], %s277
        // Predicated region
        $region37: #{a_call__.1} parent=35 // pred_check
          %p279 = pneg %p52
        $region38: #{a_call__.1} parent=35 // pred_check_branch
          %281 = sbr.rel (%p279) target = $region40
        $region39: #{a_call__.1} parent=35 // pred_region
          %282 = dma.done %s275, 9728
        $region40: #{a_call__.1} parent=35 // pred_fallthru
          _
        // Predicated region
        $region41: #{a_call__.1} parent=35 // pred_check
          %p283 = pneg %p103
        $region42: #{a_call__.1} parent=35 // pred_check_branch
          %285 = sbr.rel (%p283) target = $region44
        $region43: #{a_call__.1} parent=35 // pred_region
          %286 = dma.done [#allocation6], 4096
        $region44: #{a_call__.1} parent=35 // pred_fallthru
          _
        %s287 = sand.u32 %s39, 1
        %s288 = scalar_lea.sflag [#allocation3], %s287
        %s289 = sand.u32 %s39, 1
        %s290 = smul.addr %s289, 608
        %s291 = scalar_lea.vmem [#allocation2], %s290
        %p292 = pneg %p52
        %p293 = pneg %p49
        %p294 = scmp.lt.s32.totalorder %s27, 1
        %s295 = scalar_select %p294, %s27, 1
        %s296 = smul.u32 8, %s295
        %s297 = ssub.s32 15, %s296
        %p298 = scmp.lt.s32.totalorder %s297, 8
        %s299 = scalar_select %p298, %s297, 8
        %s300 = smul.u32 128, %s299
        %s301 = smul.u32 %s300, 4
        %p302 = scmp.lt.s32.totalorder %s296, 14
        %s303 = scalar_select %p302, %s296, 14
        %s304 = smul.addr %s303, 4
        %s305 = smul.addr %s304, 8
        %s306 = scalar_lea.vmem %s1, %s305
        %p307 = pneg %p82
        %p308 = pneg %p79
        %p309 = pneg %p103
        %p310 = pneg %p100
        %p311 = pneg %p124
        %p312 = pneg %p121
        %p313 = pneg %p154
        %p314 = pneg %p151
        %s315 = sand.u32 %s141, 1
        %s316 = scalar_lea.sflag [#allocation4], %s315
        %s317 = sand.u32 %s141, 1
        %s318 = smul.addr %s317, 608
        %s319 = scalar_lea.vmem [#allocation7], %s318
        %p320 = pneg %p184
        %p321 = pneg %p181
        %s322 = sand.u32 %s171, 1
        %s323 = scalar_lea.sflag [#allocation9], %s322
        %s324 = sand.u32 %s171, 1
        %s325 = smul.addr %s324, 256
        %s326 = scalar_lea.vmem [#allocation8], %s325
        %p327 = scmp.lt.s32.totalorder %s27, 1
        %s328 = scalar_select %p327, %s27, 1
        %s329 = smul.u32 19, %s328
        %p330 = scmp.lt.s32.totalorder %s27, 1
        %s331 = scalar_select %p330, %s27, 1
        %s332 = smul.u32 8, %s331
        %s333 = ssub.s32 15, %s332
        %p334 = scmp.lt.s32.totalorder %s333, 8
        %s335 = scalar_select %p334, %s333, 8
        %s336 = smul.u32 128, %s335
        %s337 = smul.u32 %s336, 4
        %p338 = scmp.lt.s32.totalorder %s332, 14
        %s339 = scalar_select %p338, %s332, 14
        %s340 = smul.addr %s339, 4
        %s341 = smul.addr %s340, 8
        %s342 = scalar_lea.vmem %s1, %s341
        %p343 = scmp.lt.s32.totalorder %s27, 1
        %s344 = scalar_select %p343, %s27, 1
        %s345 = smul.u32 8, %s344
        %s346 = ssub.s32 15, %s345
        %p347 = scmp.lt.s32.totalorder %s346, 8
        %s348 = scalar_select %p347, %s346, 8
        %s349 = smul.u32 128, %s348
        %s350 = smul.u32 %s349, 4
        %p351 = scmp.lt.s32.totalorder %s27, 1
        %s352 = scalar_select %p351, %s27, 1
        %s353 = smul.u32 19, %s352
        %p354 = scmp.lt.s32.totalorder %s27, 1
        %s355 = scalar_select %p354, %s27, 1
        %s356 = smul.u32 8, %s355
        %s357 = ssub.s32 15, %s356
        %p358 = scmp.lt.s32.totalorder %s357, 8
        %s359 = scalar_select %p358, %s357, 8
        %s360 = smul.u32 128, %s359
        %s361 = smul.u32 %s360, 4
        %v363 = vld [vmem:[#allocation5] sm:$0xf]
        %v364 = vld [vmem:[#allocation5 + $0x4] sm:$0xf]
        %v365 = vld [vmem:[#allocation5 + $0x8] sm:$0xf]
        %v366 = vld [vmem:[#allocation5 + $0xc] sm:$0xf]
        %v367 = vld [vmem:[#allocation5 + $0x10] sm:$0xf]
        %v368 = vld [vmem:[#allocation5 + $0x14] sm:$0xf]
        %v369 = vld [vmem:[#allocation5 + $0x18] sm:$0xf]
        %v370 = vld [vmem:[#allocation5 + $0x1c] sm:$0xf]
        %v371 = vld [vmem:[#allocation5 + $0x20] sm:$0xf]
        %v372 = vld [vmem:[#allocation5 + $0x24] sm:$0xf]
        %v373 = vld [vmem:[#allocation5 + $0x28] sm:$0xf]
        %v374 = vld [vmem:[#allocation5 + $0x2c] sm:$0xf]
        %v375 = vld [vmem:[#allocation5 + $0x30] sm:$0xf]
        %v376 = vld [vmem:[#allocation5 + $0x34] sm:$0xf]
        %v377 = vld [vmem:[#allocation5 + $0x38] sm:$0xf]
        %v378 = vld [vmem:[#allocation5 + $0x3c] sm:$0xf]
        %v379 = vld [vmem:[#allocation5 + $0x40] sm:$0xf]
        %v380 = vld [vmem:[#allocation5 + $0x44] sm:$0xf]
        %v381 = vld [vmem:[#allocation5 + $0x48] sm:$0xf]
        %v382 = vld [vmem:[#allocation5 + $0x4c] sm:$0xf]
        %v383 = vld [vmem:[#allocation5 + $0x50] sm:$0xf]
        %v384 = vld [vmem:[#allocation5 + $0x54] sm:$0xf]
        %v385 = vld [vmem:[#allocation5 + $0x58] sm:$0xf]
        %v386 = vld [vmem:[#allocation5 + $0x5c] sm:$0xf]
        %v387 = vld [vmem:[#allocation5 + $0x60] sm:$0xf]
        %v388 = vld [vmem:[#allocation5 + $0x64] sm:$0xf]
        %v389 = vld [vmem:[#allocation5 + $0x68] sm:$0xf]
        %v390 = vld [vmem:[#allocation5 + $0x6c] sm:$0xf]
        %v391 = vld [vmem:[#allocation5 + $0x70] sm:$0xf]
        %v392 = vld [vmem:[#allocation5 + $0x74] sm:$0xf]
        %v393 = vld [vmem:[#allocation5 + $0x78] sm:$0xf]
        %v394 = vld [vmem:[#allocation5 + $0x7c] sm:$0xf]
        %v395 = vld [vmem:[#allocation5 + $0x80] sm:$0xf]
        %v396 = vld [vmem:[#allocation5 + $0x84] sm:$0xf]
        %v397 = vld [vmem:[#allocation5 + $0x88] sm:$0xf]
        %v398 = vld [vmem:[#allocation5 + $0x8c] sm:$0xf]
        %v399 = vld [vmem:[#allocation5 + $0x90] sm:$0xf]
        %v400 = vld [vmem:[#allocation5 + $0x94] sm:$0xf]
        %v401 = vld [vmem:[#allocation5 + $0x98] sm:$0xf]
        %v402 = vld [vmem:[#allocation5 + $0x9c] sm:$0xf]
        %v403 = vld [vmem:[#allocation5 + $0xa0] sm:$0xf]
        %v404 = vld [vmem:[#allocation5 + $0xa4] sm:$0xf]
        %v405 = vld [vmem:[#allocation5 + $0xa8] sm:$0xf]
        %v406 = vld [vmem:[#allocation5 + $0xac] sm:$0xf]
        %v407 = vld [vmem:[#allocation5 + $0xb0] sm:$0xf]
        %v408 = vld [vmem:[#allocation5 + $0xb4] sm:$0xf]
        %v409 = vld [vmem:[#allocation5 + $0xb8] sm:$0xf]
        %v410 = vld [vmem:[#allocation5 + $0xbc] sm:$0xf]
        %v411 = vld [vmem:[#allocation5 + $0xc0] sm:$0xf]
        %v412 = vld [vmem:[#allocation5 + $0xc4] sm:$0xf]
        %v413 = vld [vmem:[#allocation5 + $0xc8] sm:$0xf]
        %v414 = vld [vmem:[#allocation5 + $0xcc] sm:$0xf]
        %v415 = vld [vmem:[#allocation5 + $0xd0] sm:$0xf]
        %v416 = vld [vmem:[#allocation5 + $0xd4] sm:$0xf]
        %v417 = vld [vmem:[#allocation5 + $0xd8] sm:$0xf]
        %v418 = vld [vmem:[#allocation5 + $0xdc] sm:$0xf]
        %v419 = vld [vmem:[#allocation5 + $0xe0] sm:$0xf]
        %v420 = vld [vmem:[#allocation5 + $0xe4] sm:$0xf]
        %v421 = vld [vmem:[#allocation5 + $0xe8] sm:$0xf]
        %v422 = vld [vmem:[#allocation5 + $0xec] sm:$0xf]
        %v423 = vld [vmem:[#allocation5 + $0xf0] sm:$0xf]
        %v424 = vld [vmem:[#allocation5 + $0xf4] sm:$0xf]
        %v425 = vld [vmem:[#allocation5 + $0xf8] sm:$0xf]
        %v426 = vld [vmem:[#allocation5 + $0xfc] sm:$0xf]
        %v427 = vld [vmem:[%s3] sm:$0xff]
        %v428 = vld [vmem:[%s3 + $0x8] sm:$0xff]
        %v429 = vld [vmem:[%s3 + $0x10] sm:$0xff]
        %v430 = vld [vmem:[%s3 + $0x18] sm:$0xff]
        %v431 = vld [vmem:[%s3 + $0x20] sm:$0xff]
        %v432 = vld [vmem:[%s3 + $0x28] sm:$0xff]
        %v433 = vld [vmem:[%s3 + $0x30] sm:$0xff]
        %v434 = vld [vmem:[%s3 + $0x38] sm:$0xff]
        %v435 = vld [vmem:[%s3 + $0x40] sm:$0xff]
        %v436 = vld [vmem:[%s3 + $0x48] sm:$0xff]
        %v437 = vld [vmem:[%s3 + $0x50] sm:$0xff]
        %v438 = vld [vmem:[%s3 + $0x58] sm:$0xff]
        %v439 = vld [vmem:[%s3 + $0x60] sm:$0xff]
        %v440 = vld [vmem:[%s3 + $0x68] sm:$0xff]
        %v441 = vld [vmem:[%s3 + $0x70] sm:$0xff]
        %v442 = vld [vmem:[%s3 + $0x78] sm:$0xff]
        %v443 = vld [vmem:[%s3 + $0x80] sm:$0xff]
        %v444 = vld [vmem:[%s3 + $0x88] sm:$0xff]
        %v445 = vld [vmem:[%s3 + $0x90] sm:$0xff]
        %v446 = vld [vmem:[%s3 + $0x98] sm:$0xff]
        %v447 = vld [vmem:[%s3 + $0xa0] sm:$0xff]
        %v448 = vld [vmem:[%s3 + $0xa8] sm:$0xff]
        %v449 = vld [vmem:[%s3 + $0xb0] sm:$0xff]
        %v450 = vld [vmem:[%s3 + $0xb8] sm:$0xff]
        %v451 = vld [vmem:[%s3 + $0xc0] sm:$0xff]
        %v452 = vld [vmem:[%s3 + $0xc8] sm:$0xff]
        %v453 = vld [vmem:[%s3 + $0xd0] sm:$0xff]
        %v454 = vld [vmem:[%s3 + $0xd8] sm:$0xff]
        %v455 = vld [vmem:[%s3 + $0xe0] sm:$0xff]
        %v456 = vld [vmem:[%s3 + $0xe8] sm:$0xff]
        %v457 = vld [vmem:[%s3 + $0xf0] sm:$0xff]
        %v458 = vld [vmem:[%s3 + $0xf8] sm:$0xff]
        %v459 = vld [vmem:[%s278] sm:$0xff]
        %v460 = vld [vmem:[%s278 + $0x8] sm:$0xff]
        %v461 = vld [vmem:[%s278 + $0x10] sm:$0xff]
        %v462 = vld [vmem:[%s278 + $0x18] sm:$0xff]
        %v463 = vld [vmem:[%s278 + $0x20] sm:$0xff]
        %v464 = vld [vmem:[%s278 + $0x28] sm:$0xff]
        %v465 = vld [vmem:[%s278 + $0x30] sm:$0xff]
        %v466 = vld [vmem:[%s278 + $0x38] sm:$0xff]
        %v467 = vld [vmem:[%s278 + $0x40] sm:$0xff]
        %v468 = vld [vmem:[%s278 + $0x48] sm:$0xff]
        %v469 = vld [vmem:[%s278 + $0x50] sm:$0xff]
        %v470 = vld [vmem:[%s278 + $0x58] sm:$0xff]
        %v471 = vld [vmem:[%s278 + $0x60] sm:$0xff]
        %v472 = vld [vmem:[%s278 + $0x68] sm:$0xff]
        %v473 = vld [vmem:[%s278 + $0x70] sm:$0xff]
        %v474 = vld [vmem:[%s278 + $0x78] sm:$0xff]
        %v475 = vld [vmem:[%s278 + $0x80] sm:$0xff]
        %v476 = vld [vmem:[%s278 + $0x88] sm:$0xff]
        %v477 = vld [vmem:[%s278 + $0x90] sm:$0xff]
        %v478 = vld [vmem:[%s278 + $0x98] sm:$0xff]
        %v479 = vld [vmem:[%s278 + $0xa0] sm:$0xff]
        %v480 = vld [vmem:[%s278 + $0xa8] sm:$0xff]
        %v481 = vld [vmem:[%s278 + $0xb0] sm:$0xff]
        %v482 = vld [vmem:[%s278 + $0xb8] sm:$0xff]
        %v483 = vld [vmem:[%s278 + $0xc0] sm:$0xff]
        %v484 = vld [vmem:[%s278 + $0xc8] sm:$0xff]
        %v485 = vld [vmem:[%s278 + $0xd0] sm:$0xff]
        %v486 = vld [vmem:[%s278 + $0xd8] sm:$0xff]
        %v487 = vld [vmem:[%s278 + $0xe0] sm:$0xff]
        %v488 = vld [vmem:[%s278 + $0xe8] sm:$0xff]
        %v489 = vld [vmem:[%s278 + $0xf0] sm:$0xff]
        %v490 = vld [vmem:[%s278 + $0xf8] sm:$0xff]
        %v491 = vld [vmem:[%s278 + $0x100] sm:$0xff]
        %v492 = vld [vmem:[%s278 + $0x108] sm:$0xff]
        %v493 = vld [vmem:[%s278 + $0x110] sm:$0xff]
        %v494 = vld [vmem:[%s278 + $0x118] sm:$0xff]
        %v495 = vld [vmem:[%s278 + $0x120] sm:$0xff]
        %v496 = vld [vmem:[%s278 + $0x128] sm:$0xff]
        %v497 = vld [vmem:[%s278 + $0x130] sm:$0xff]
        %v498 = vld [vmem:[%s278 + $0x138] sm:$0xff]
        %v499 = vld [vmem:[%s278 + $0x140] sm:$0xff]
        %v500 = vld [vmem:[%s278 + $0x148] sm:$0xff]
        %v501 = vld [vmem:[%s278 + $0x150] sm:$0xff]
        %v502 = vld [vmem:[%s278 + $0x158] sm:$0xff]
        %v503 = vld [vmem:[%s278 + $0x160] sm:$0xff]
        %v504 = vld [vmem:[%s278 + $0x168] sm:$0xff]
        %v505 = vld [vmem:[%s278 + $0x170] sm:$0xff]
        %v506 = vld [vmem:[%s278 + $0x178] sm:$0xff]
        %v507 = vld [vmem:[%s278 + $0x180] sm:$0xff]
        %v508 = vld [vmem:[%s278 + $0x188] sm:$0xff]
        %v509 = vld [vmem:[%s278 + $0x190] sm:$0xff]
        %v510 = vld [vmem:[%s278 + $0x198] sm:$0xff]
        %v511 = vld [vmem:[%s278 + $0x1a0] sm:$0xff]
        %v512 = vld [vmem:[%s278 + $0x1a8] sm:$0xff]
        %v513 = vld [vmem:[%s278 + $0x1b0] sm:$0xff]
        %v514 = vld [vmem:[%s278 + $0x1b8] sm:$0xff]
        %v515 = vld [vmem:[%s278 + $0x1c0] sm:$0xff]
        %v516 = vld [vmem:[%s278 + $0x1c8] sm:$0xff]
        %v517 = vld [vmem:[%s278 + $0x1d0] sm:$0xff]
        %v518 = vld [vmem:[%s278 + $0x1d8] sm:$0xff]
        %v519 = vld [vmem:[%s278 + $0x1e0] sm:$0xff]
        %v520 = vld [vmem:[%s278 + $0x1e8] sm:$0xff]
        %v521 = vld [vmem:[%s278 + $0x1f0] sm:$0xff]
        %v522 = vld [vmem:[%s278 + $0x1f8] sm:$0xff]
        %v523 = vld [vmem:[%s278 + $0x200] sm:$0xff]
        %v524 = vld [vmem:[%s278 + $0x208] sm:$0xff]
        %v525 = vld [vmem:[%s278 + $0x210] sm:$0xff]
        %v526 = vld [vmem:[%s278 + $0x218] sm:$0xff]
        %v527 = vld [vmem:[%s278 + $0x220] sm:$0xff]
        %v528 = vld [vmem:[%s278 + $0x228] sm:$0xff]
        %v529 = vld [vmem:[%s278 + $0x230] sm:$0xff]
        %v530 = vld [vmem:[%s278 + $0x238] sm:$0xff]
        %v531 = vld [vmem:[%s278 + $0x240] sm:$0xff]
        %v532 = vld [vmem:[%s278 + $0x248] sm:$0xff]
        %v533 = vld [vmem:[%s278 + $0x250] sm:$0xff]
        %v534 = vld [vmem:[%s278 + $0x258] sm:$0xff]
        %v535 = vpack.c.bf16 %v463, %v459
        %v536 = vpack.c.bf16 %v464, %v460
        %v537 = vpack.c.bf16 %v465, %v461
        %v538 = vpack.c.bf16 %v466, %v462
        %v539 = vpack.c.bf16 %v471, %v467
        %v540 = vpack.c.bf16 %v472, %v468
        %v541 = vpack.c.bf16 %v473, %v469
        %v542 = vpack.c.bf16 %v474, %v470
        %v543 = vpack.c.bf16 %v479, %v475
        %v544 = vpack.c.bf16 %v480, %v476
        %v545 = vpack.c.bf16 %v481, %v477
        %v546 = vpack.c.bf16 %v482, %v478
        %v547 = vpack.c.bf16 %v487, %v483
        %v548 = vpack.c.bf16 %v488, %v484
        %v549 = vpack.c.bf16 %v489, %v485
        %v550 = vpack.c.bf16 %v490, %v486
        %v551 = vpack.c.bf16 %v495, %v491
        %v552 = vpack.c.bf16 %v496, %v492
        %v553 = vpack.c.bf16 %v497, %v493
        %v554 = vpack.c.bf16 %v498, %v494
        %v555 = vpack.c.bf16 %v503, %v499
        %v556 = vpack.c.bf16 %v504, %v500
        %v557 = vpack.c.bf16 %v505, %v501
        %v558 = vpack.c.bf16 %v506, %v502
        %v559 = vpack.c.bf16 %v511, %v507
        %v560 = vpack.c.bf16 %v512, %v508
        %v561 = vpack.c.bf16 %v513, %v509
        %v562 = vpack.c.bf16 %v514, %v510
        %v563 = vpack.c.bf16 %v519, %v515
        %v564 = vpack.c.bf16 %v520, %v516
        %v565 = vpack.c.bf16 %v521, %v517
        %v566 = vpack.c.bf16 %v522, %v518
        %v567 = vpack.c.bf16 %v527, %v523
        %v568 = vpack.c.bf16 %v528, %v524
        %v569 = vpack.c.bf16 %v529, %v525
        %v570 = vpack.c.bf16 %v530, %v526
        %v571 = vpack.c.bf16 %v531, %v531
        %v572 = vpack.c.bf16 %v532, %v532
        %v573 = vpack.c.bf16 %v533, %v533
        %v574 = vpack.c.bf16 %v534, %v534
        %v639 = vunpack.c.l.b16 %v363
        %v640 = vunpack.c.l.b16 %v364
        %v641 = vunpack.c.l.b16 %v365
        %v642 = vunpack.c.l.b16 %v366
        %v643 = vunpack.c.l.b16 %v367
        %v644 = vunpack.c.l.b16 %v368
        %v645 = vunpack.c.l.b16 %v369
        %v646 = vunpack.c.l.b16 %v370
        %v647 = vunpack.c.l.b16 %v371
        %v648 = vunpack.c.l.b16 %v372
        %v649 = vunpack.c.l.b16 %v373
        %v650 = vunpack.c.l.b16 %v374
        %v651 = vunpack.c.l.b16 %v375
        %v652 = vunpack.c.l.b16 %v376
        %v653 = vunpack.c.l.b16 %v377
        %v654 = vunpack.c.l.b16 %v378
        %v655 = vunpack.c.l.b16 %v379
        %v656 = vunpack.c.l.b16 %v380
        %v657 = vunpack.c.l.b16 %v381
        %v658 = vunpack.c.l.b16 %v382
        %v659 = vunpack.c.l.b16 %v383
        %v660 = vunpack.c.l.b16 %v384
        %v661 = vunpack.c.l.b16 %v385
        %v662 = vunpack.c.l.b16 %v386
        %v663 = vunpack.c.l.b16 %v387
        %v664 = vunpack.c.l.b16 %v388
        %v665 = vunpack.c.l.b16 %v389
        %v666 = vunpack.c.l.b16 %v390
        %v667 = vunpack.c.l.b16 %v391
        %v668 = vunpack.c.l.b16 %v392
        %v669 = vunpack.c.l.b16 %v393
        %v670 = vunpack.c.l.b16 %v394
        %v671 = vunpack.c.l.b16 %v395
        %v672 = vunpack.c.l.b16 %v396
        %v673 = vunpack.c.l.b16 %v397
        %v674 = vunpack.c.l.b16 %v398
        %v675 = vunpack.c.l.b16 %v399
        %v676 = vunpack.c.l.b16 %v400
        %v677 = vunpack.c.l.b16 %v401
        %v678 = vunpack.c.l.b16 %v402
        %v679 = vunpack.c.l.b16 %v403
        %v680 = vunpack.c.l.b16 %v404
        %v681 = vunpack.c.l.b16 %v405
        %v682 = vunpack.c.l.b16 %v406
        %v683 = vunpack.c.l.b16 %v407
        %v684 = vunpack.c.l.b16 %v408
        %v685 = vunpack.c.l.b16 %v409
        %v686 = vunpack.c.l.b16 %v410
        %v687 = vunpack.c.l.b16 %v411
        %v688 = vunpack.c.l.b16 %v412
        %v689 = vunpack.c.l.b16 %v413
        %v690 = vunpack.c.l.b16 %v414
        %v691 = vunpack.c.l.b16 %v415
        %v692 = vunpack.c.l.b16 %v416
        %v693 = vunpack.c.l.b16 %v417
        %v694 = vunpack.c.l.b16 %v418
        %v695 = vunpack.c.l.b16 %v419
        %v696 = vunpack.c.l.b16 %v420
        %v697 = vunpack.c.l.b16 %v421
        %v698 = vunpack.c.l.b16 %v422
        %v699 = vunpack.c.l.b16 %v423
        %v700 = vunpack.c.l.b16 %v424
        %v701 = vunpack.c.l.b16 %v425
        %v702 = vunpack.c.l.b16 %v426
        %v703 = vpack.c.b16 %v640, %v639
        %v704 = vpack.c.b16 %v642, %v641
        %v705 = vpack.c.b16 %v644, %v643
        %v706 = vpack.c.b16 %v646, %v645
        %v707 = vpack.c.b16 %v648, %v647
        %v708 = vpack.c.b16 %v650, %v649
        %v709 = vpack.c.b16 %v652, %v651
        %v710 = vpack.c.b16 %v654, %v653
        %v711 = vpack.c.b16 %v656, %v655
        %v712 = vpack.c.b16 %v658, %v657
        %v713 = vpack.c.b16 %v660, %v659
        %v714 = vpack.c.b16 %v662, %v661
        %v715 = vpack.c.b16 %v664, %v663
        %v716 = vpack.c.b16 %v666, %v665
        %v717 = vpack.c.b16 %v668, %v667
        %v718 = vpack.c.b16 %v670, %v669
        %v719 = vpack.c.b16 %v672, %v671
        %v720 = vpack.c.b16 %v674, %v673
        %v721 = vpack.c.b16 %v676, %v675
        %v722 = vpack.c.b16 %v678, %v677
        %v723 = vpack.c.b16 %v680, %v679
        %v724 = vpack.c.b16 %v682, %v681
        %v725 = vpack.c.b16 %v684, %v683
        %v726 = vpack.c.b16 %v686, %v685
        %v727 = vpack.c.b16 %v688, %v687
        %v728 = vpack.c.b16 %v690, %v689
        %v729 = vpack.c.b16 %v692, %v691
        %v730 = vpack.c.b16 %v694, %v693
        %v731 = vpack.c.b16 %v696, %v695
        %v732 = vpack.c.b16 %v698, %v697
        %v733 = vpack.c.b16 %v700, %v699
        %v734 = vpack.c.b16 %v702, %v701
        %767 = vmatprep.subr.bf16.mxu0 0
        %768 = vmatpush1.bf16.msra.mxu0 %v703
        %769 = vmatprep.subr.bf16.mxu0 0
        %770 = vmatpush1.bf16.msra.mxu0 %v704
        %771 = vmatprep.subr.bf16.mxu0 0
        %772 = vmatpush1.bf16.msra.mxu0 %v705
        %773 = vmatprep.subr.bf16.mxu0 0
        %774 = vmatpush1.bf16.msra.mxu0 %v706
        %775 = vmatprep.subr.bf16.mxu0 0
        %776 = vmatpush1.bf16.msra.mxu0 %v707
        %777 = vmatprep.subr.bf16.mxu0 0
        %778 = vmatpush1.bf16.msra.mxu0 %v708
        %779 = vmatprep.subr.bf16.mxu0 0
        %780 = vmatpush1.bf16.msra.mxu0 %v709
        %781 = vmatprep.subr.bf16.mxu0 0
        %782 = vmatpush1.bf16.msra.mxu0 %v710
        %783 = vmatprep.subr.bf16.mxu0 0
        %784 = vmatpush1.bf16.msra.mxu0 %v711
        %785 = vmatprep.subr.bf16.mxu0 0
        %786 = vmatpush1.bf16.msra.mxu0 %v712
        %787 = vmatprep.subr.bf16.mxu0 0
        %788 = vmatpush1.bf16.msra.mxu0 %v713
        %789 = vmatprep.subr.bf16.mxu0 0
        %790 = vmatpush1.bf16.msra.mxu0 %v714
        %791 = vmatprep.subr.bf16.mxu0 0
        %792 = vmatpush1.bf16.msra.mxu0 %v715
        %793 = vmatprep.subr.bf16.mxu0 0
        %794 = vmatpush1.bf16.msra.mxu0 %v716
        %795 = vmatprep.subr.bf16.mxu0 0
        %796 = vmatpush1.bf16.msra.mxu0 %v717
        %797 = vmatprep.subr.bf16.mxu0 0
        %798 = vmatpush1.bf16.msra.mxu0 %v718
        %799 = vmatprep.mubr.bf16.mxu0 %v536
        %800 = vmatmul.mubr.bf16.gmra.mrb[0].mxu0 %v535
        %v801 = vpop.f32.mrb[0].mxu0
        %v802 = vadd.f32 0.0, %v801
        %v803 = vpop.f32.mrb[0].mxu0
        %v804 = vpop.f32.mrb[0].mxu0
        %v805 = vadd.f32 0.0, %v804
        %v806 = vpop.f32.mrb[0].mxu0
        %807 = vmatprep.mubr.bf16.mxu0 %v540
        %808 = vmatmul.mubr.bf16.gmra.mrb[0].mxu0 %v539
        %v809 = vpop.f32.mrb[0].mxu0
        %v810 = vadd.f32 0.0, %v809
        %v811 = vpop.f32.mrb[0].mxu0
        %v812 = vpop.f32.mrb[0].mxu0
        %v813 = vadd.f32 0.0, %v812
        %v814 = vpop.f32.mrb[0].mxu0
        %815 = vmatprep.mubr.bf16.mxu0 %v544
        %816 = vmatmul.mubr.bf16.gmra.mrb[0].mxu0 %v543
        %v817 = vpop.f32.mrb[0].mxu0
        %v818 = vadd.f32 0.0, %v817
        %v819 = vpop.f32.mrb[0].mxu0
        %v820 = vpop.f32.mrb[0].mxu0
        %v821 = vadd.f32 0.0, %v820
        %v822 = vpop.f32.mrb[0].mxu0
        %823 = vmatprep.mubr.bf16.mxu0 %v548
        %824 = vmatmul.mubr.bf16.gmra.mrb[0].mxu0 %v547
        %v825 = vpop.f32.mrb[0].mxu0
        %v826 = vadd.f32 0.0, %v825
        %v827 = vpop.f32.mrb[0].mxu0
        %v828 = vpop.f32.mrb[0].mxu0
        %v829 = vadd.f32 0.0, %v828
        %v830 = vpop.f32.mrb[0].mxu0
        %831 = vmatprep.mubr.bf16.mxu0 %v552
        %832 = vmatmul.mubr.bf16.gmra.mrb[0].mxu0 %v551
        %v833 = vpop.f32.mrb[0].mxu0
        %v834 = vadd.f32 0.0, %v833
        %v835 = vpop.f32.mrb[0].mxu0
        %v836 = vpop.f32.mrb[0].mxu0
        %v837 = vadd.f32 0.0, %v836
        %v838 = vpop.f32.mrb[0].mxu0
        %839 = vmatprep.mubr.bf16.mxu0 %v556
        %840 = vmatmul.mubr.bf16.gmra.mrb[0].mxu0 %v555
        %v841 = vpop.f32.mrb[0].mxu0
        %v842 = vadd.f32 0.0, %v841
        %v843 = vpop.f32.mrb[0].mxu0
        %v844 = vpop.f32.mrb[0].mxu0
        %v845 = vadd.f32 0.0, %v844
        %v846 = vpop.f32.mrb[0].mxu0
        %847 = vmatprep.mubr.bf16.mxu0 %v560
        %848 = vmatmul.mubr.bf16.gmra.mrb[0].mxu0 %v559
        %v849 = vpop.f32.mrb[0].mxu0
        %v850 = vadd.f32 0.0, %v849
        %v851 = vpop.f32.mrb[0].mxu0
        %v852 = vpop.f32.mrb[0].mxu0
        %v853 = vadd.f32 0.0, %v852
        %v854 = vpop.f32.mrb[0].mxu0
        %855 = vmatprep.mubr.bf16.mxu0 %v564
        %856 = vmatmul.mubr.bf16.gmra.mrb[0].mxu0 %v563
        %v857 = vpop.f32.mrb[0].mxu0
        %v858 = vadd.f32 0.0, %v857
        %v859 = vpop.f32.mrb[0].mxu0
        %v860 = vpop.f32.mrb[0].mxu0
        %v861 = vadd.f32 0.0, %v860
        %v862 = vpop.f32.mrb[0].mxu0
        %863 = vmatprep.mubr.bf16.mxu0 %v568
        %864 = vmatmul.mubr.bf16.gmra.mrb[0].mxu0 %v567
        %v865 = vpop.f32.mrb[0].mxu0
        %v866 = vadd.f32 0.0, %v865
        %v867 = vpop.f32.mrb[0].mxu0
        %v868 = vpop.f32.mrb[0].mxu0
        %v869 = vadd.f32 0.0, %v868
        %v870 = vpop.f32.mrb[0].mxu0
        %871 = vmatprep.mubr.bf16.mxu0 %v572
        %872 = vmatmul.mubr.bf16.gmra.mrb[0].mxu0 %v571
        %v873 = vpop.f32.mrb[0].mxu0
        %v874 = vadd.f32 0.0, %v873
        %v875 = vpop.f32.mrb[0].mxu0
        %v876 = vpop.f32.mrb[0].mxu0
        %v877 = vpop.f32.mrb[0].mxu0
        %878 = vdwg.mxu0
        %879 = vmatprep.subr.bf16.mxu0 0
        %880 = vmatpush1.bf16.msra.mxu0 %v719
        %881 = vmatprep.subr.bf16.mxu0 0
        %882 = vmatpush1.bf16.msra.mxu0 %v720
        %883 = vmatprep.subr.bf16.mxu0 0
        %884 = vmatpush1.bf16.msra.mxu0 %v721
        %885 = vmatprep.subr.bf16.mxu0 0
        %886 = vmatpush1.bf16.msra.mxu0 %v722
        %887 = vmatprep.subr.bf16.mxu0 0
        %888 = vmatpush1.bf16.msra.mxu0 %v723
        %889 = vmatprep.subr.bf16.mxu0 0
        %890 = vmatpush1.bf16.msra.mxu0 %v724
        %891 = vmatprep.subr.bf16.mxu0 0
        %892 = vmatpush1.bf16.msra.mxu0 %v725
        %893 = vmatprep.subr.bf16.mxu0 0
        %894 = vmatpush1.bf16.msra.mxu0 %v726
        %895 = vmatprep.subr.bf16.mxu0 0
        %896 = vmatpush1.bf16.msra.mxu0 %v727
        %897 = vmatprep.subr.bf16.mxu0 0
        %898 = vmatpush1.bf16.msra.mxu0 %v728
        %899 = vmatprep.subr.bf16.mxu0 0
        %900 = vmatpush1.bf16.msra.mxu0 %v729
        %901 = vmatprep.subr.bf16.mxu0 0
        %902 = vmatpush1.bf16.msra.mxu0 %v730
        %903 = vmatprep.subr.bf16.mxu0 0
        %904 = vmatpush1.bf16.msra.mxu0 %v731
        %905 = vmatprep.subr.bf16.mxu0 0
        %906 = vmatpush1.bf16.msra.mxu0 %v732
        %907 = vmatprep.subr.bf16.mxu0 0
        %908 = vmatpush1.bf16.msra.mxu0 %v733
        %909 = vmatprep.subr.bf16.mxu0 0
        %910 = vmatpush1.bf16.msra.mxu0 %v734
        %911 = vmatprep.mubr.bf16.mxu0 %v538
        %912 = vmatmul.mubr.bf16.gmra.mrb[0].mxu0 %v537
        %v913 = vpop.f32.mrb[0].mxu0
        %v914 = vadd.f32 %v802, %v913
        %v915 = vpop.f32.mrb[0].mxu0
        %v916 = vpop.f32.mrb[0].mxu0
        %v917 = vadd.f32 %v805, %v916
        %v918 = vpop.f32.mrb[0].mxu0
        %919 = vmatprep.mubr.bf16.mxu0 %v542
        %920 = vmatmul.mubr.bf16.gmra.mrb[0].mxu0 %v541
        %v921 = vpop.f32.mrb[0].mxu0
        %v922 = vadd.f32 %v810, %v921
        %v923 = vpop.f32.mrb[0].mxu0
        %v924 = vpop.f32.mrb[0].mxu0
        %v925 = vadd.f32 %v813, %v924
        %v926 = vpop.f32.mrb[0].mxu0
        %927 = vmatprep.mubr.bf16.mxu0 %v546
        %928 = vmatmul.mubr.bf16.gmra.mrb[0].mxu0 %v545
        %v929 = vpop.f32.mrb[0].mxu0
        %v930 = vadd.f32 %v818, %v929
        %v931 = vpop.f32.mrb[0].mxu0
        %v932 = vpop.f32.mrb[0].mxu0
        %v933 = vadd.f32 %v821, %v932
        %v934 = vpop.f32.mrb[0].mxu0
        %935 = vmatprep.mubr.bf16.mxu0 %v550
        %936 = vmatmul.mubr.bf16.gmra.mrb[0].mxu0 %v549
        %v937 = vpop.f32.mrb[0].mxu0
        %v938 = vadd.f32 %v826, %v937
        %v939 = vpop.f32.mrb[0].mxu0
        %v940 = vpop.f32.mrb[0].mxu0
        %v941 = vadd.f32 %v829, %v940
        %v942 = vpop.f32.mrb[0].mxu0
        %943 = vmatprep.mubr.bf16.mxu0 %v554
        %944 = vmatmul.mubr.bf16.gmra.mrb[0].mxu0 %v553
        %v945 = vpop.f32.mrb[0].mxu0
        %v946 = vadd.f32 %v834, %v945
        %v947 = vpop.f32.mrb[0].mxu0
        %v948 = vpop.f32.mrb[0].mxu0
        %v949 = vadd.f32 %v837, %v948
        %v950 = vpop.f32.mrb[0].mxu0
        %951 = vmatprep.mubr.bf16.mxu0 %v558
        %952 = vmatmul.mubr.bf16.gmra.mrb[0].mxu0 %v557
        %v953 = vpop.f32.mrb[0].mxu0
        %v954 = vadd.f32 %v842, %v953
        %v955 = vpop.f32.mrb[0].mxu0
        %v956 = vpop.f32.mrb[0].mxu0
        %v957 = vadd.f32 %v845, %v956
        %v958 = vpop.f32.mrb[0].mxu0
        %959 = vmatprep.mubr.bf16.mxu0 %v562
        %960 = vmatmul.mubr.bf16.gmra.mrb[0].mxu0 %v561
        %v961 = vpop.f32.mrb[0].mxu0
        %v962 = vadd.f32 %v850, %v961
        %v963 = vpop.f32.mrb[0].mxu0
        %v964 = vpop.f32.mrb[0].mxu0
        %v965 = vadd.f32 %v853, %v964
        %v966 = vpop.f32.mrb[0].mxu0
        %967 = vmatprep.mubr.bf16.mxu0 %v566
        %968 = vmatmul.mubr.bf16.gmra.mrb[0].mxu0 %v565
        %v969 = vpop.f32.mrb[0].mxu0
        %v970 = vadd.f32 %v858, %v969
        %v971 = vpop.f32.mrb[0].mxu0
        %v972 = vpop.f32.mrb[0].mxu0
        %v973 = vadd.f32 %v861, %v972
        %v974 = vpop.f32.mrb[0].mxu0
        %975 = vmatprep.mubr.bf16.mxu0 %v570
        %976 = vmatmul.mubr.bf16.gmra.mrb[0].mxu0 %v569
        %v977 = vpop.f32.mrb[0].mxu0
        %v978 = vadd.f32 %v866, %v977
        %v979 = vpop.f32.mrb[0].mxu0
        %v980 = vpop.f32.mrb[0].mxu0
        %v981 = vadd.f32 %v869, %v980
        %v982 = vpop.f32.mrb[0].mxu0
        %983 = vmatprep.mubr.bf16.mxu0 %v574
        %984 = vmatmul.mubr.bf16.gmra.mrb[0].mxu0 %v573
        %v985 = vpop.f32.mrb[0].mxu0
        %v986 = vadd.f32 %v874, %v985
        %v987 = vpop.f32.mrb[0].mxu0
        %v988 = vpop.f32.mrb[0].mxu0
        %v989 = vpop.f32.mrb[0].mxu0
        %990 = vdwg.mxu0
        %v991 = vmax.f32 %v914, 0.0
        %v992 = vmax.f32 %v917, 0.0
        %v993 = vmax.f32 %v922, 0.0
        %v994 = vmax.f32 %v925, 0.0
        %v995 = vmax.f32 %v930, 0.0
        %v996 = vmax.f32 %v933, 0.0
        %v997 = vmax.f32 %v938, 0.0
        %v998 = vmax.f32 %v941, 0.0
        %v999 = vmax.f32 %v946, 0.0
        %v1000 = vmax.f32 %v949, 0.0
        %v1001 = vmax.f32 %v954, 0.0
        %v1002 = vmax.f32 %v957, 0.0
        %v1003 = vmax.f32 %v962, 0.0
        %v1004 = vmax.f32 %v965, 0.0
        %v1005 = vmax.f32 %v970, 0.0
        %v1006 = vmax.f32 %v973, 0.0
        %v1007 = vmax.f32 %v978, 0.0
        %v1008 = vmax.f32 %v981, 0.0
        %v1009 = vmax.f32 %v986, 0.0
        %v1010 = vpack.c.bf16 %v992, %v991
        %v1011 = vpack.c.bf16 %v994, %v993
        %v1012 = vpack.c.bf16 %v996, %v995
        %v1013 = vpack.c.bf16 %v998, %v997
        %v1014 = vpack.c.bf16 %v1000, %v999
        %v1015 = vpack.c.bf16 %v1002, %v1001
        %v1016 = vpack.c.bf16 %v1004, %v1003
        %v1017 = vpack.c.bf16 %v1006, %v1005
        %v1018 = vpack.c.bf16 %v1008, %v1007
        %v1019 = vpack.c.bf16 %v1009, %v1009
        %v1052 = vunpack.c.l.b16 %v427
        %v1053 = vunpack.c.h.b16 %v427
        %v1054 = vunpack.c.l.b16 %v428
        %v1055 = vunpack.c.h.b16 %v428
        %v1056 = vunpack.c.l.b16 %v429
        %v1057 = vunpack.c.h.b16 %v429
        %v1058 = vunpack.c.l.b16 %v430
        %v1059 = vunpack.c.h.b16 %v430
        %v1060 = vunpack.c.l.b16 %v431
        %v1061 = vunpack.c.h.b16 %v431
        %v1062 = vunpack.c.l.b16 %v432
        %v1063 = vunpack.c.h.b16 %v432
        %v1064 = vunpack.c.l.b16 %v433
        %v1065 = vunpack.c.h.b16 %v433
        %v1066 = vunpack.c.l.b16 %v434
        %v1067 = vunpack.c.h.b16 %v434
        %v1068 = vunpack.c.l.b16 %v435
        %v1069 = vunpack.c.h.b16 %v435
        %v1070 = vunpack.c.l.b16 %v436
        %v1071 = vunpack.c.h.b16 %v436
        %v1072 = vunpack.c.l.b16 %v437
        %v1073 = vunpack.c.h.b16 %v437
        %v1074 = vunpack.c.l.b16 %v438
        %v1075 = vunpack.c.h.b16 %v438
        %v1076 = vunpack.c.l.b16 %v439
        %v1077 = vunpack.c.h.b16 %v439
        %v1078 = vunpack.c.l.b16 %v440
        %v1079 = vunpack.c.h.b16 %v440
        %v1080 = vunpack.c.l.b16 %v441
        %v1081 = vunpack.c.h.b16 %v441
        %v1082 = vunpack.c.l.b16 %v442
        %v1083 = vunpack.c.h.b16 %v442
        %v1084 = vunpack.c.l.b16 %v443
        %v1085 = vunpack.c.h.b16 %v443
        %v1086 = vunpack.c.l.b16 %v444
        %v1087 = vunpack.c.h.b16 %v444
        %v1088 = vunpack.c.l.b16 %v445
        %v1089 = vunpack.c.h.b16 %v445
        %v1090 = vunpack.c.l.b16 %v446
        %v1091 = vunpack.c.h.b16 %v446
        %v1092 = vunpack.c.l.b16 %v447
        %v1093 = vunpack.c.h.b16 %v447
        %v1094 = vunpack.c.l.b16 %v448
        %v1095 = vunpack.c.h.b16 %v448
        %v1096 = vunpack.c.l.b16 %v449
        %v1097 = vunpack.c.h.b16 %v449
        %v1098 = vunpack.c.l.b16 %v450
        %v1099 = vunpack.c.h.b16 %v450
        %v1100 = vunpack.c.l.b16 %v451
        %v1101 = vunpack.c.h.b16 %v451
        %v1102 = vunpack.c.l.b16 %v452
        %v1103 = vunpack.c.h.b16 %v452
        %v1104 = vunpack.c.l.b16 %v453
        %v1105 = vunpack.c.h.b16 %v453
        %v1106 = vunpack.c.l.b16 %v454
        %v1107 = vunpack.c.h.b16 %v454
        %v1108 = vunpack.c.l.b16 %v455
        %v1109 = vunpack.c.h.b16 %v455
        %v1110 = vunpack.c.l.b16 %v456
        %v1111 = vunpack.c.h.b16 %v456
        %v1112 = vunpack.c.l.b16 %v457
        %v1113 = vunpack.c.h.b16 %v457
        %v1114 = vunpack.c.l.b16 %v458
        %v1115 = vunpack.c.h.b16 %v458
        %v1116 = vpack.c.b16 %v1056, %v1052
        %v1117 = vpack.c.b16 %v1057, %v1053
        %v1118 = vpack.c.b16 %v1058, %v1054
        %v1119 = vpack.c.b16 %v1059, %v1055
        %v1120 = vpack.c.b16 %v1064, %v1060
        %v1121 = vpack.c.b16 %v1065, %v1061
        %v1122 = vpack.c.b16 %v1066, %v1062
        %v1123 = vpack.c.b16 %v1067, %v1063
        %v1124 = vpack.c.b16 %v1072, %v1068
        %v1125 = vpack.c.b16 %v1073, %v1069
        %v1126 = vpack.c.b16 %v1074, %v1070
        %v1127 = vpack.c.b16 %v1075, %v1071
        %v1128 = vpack.c.b16 %v1080, %v1076
        %v1129 = vpack.c.b16 %v1081, %v1077
        %v1130 = vpack.c.b16 %v1082, %v1078
        %v1131 = vpack.c.b16 %v1083, %v1079
        %v1132 = vpack.c.b16 %v1088, %v1084
        %v1133 = vpack.c.b16 %v1089, %v1085
        %v1134 = vpack.c.b16 %v1090, %v1086
        %v1135 = vpack.c.b16 %v1091, %v1087
        %v1136 = vpack.c.b16 %v1096, %v1092
        %v1137 = vpack.c.b16 %v1097, %v1093
        %v1138 = vpack.c.b16 %v1098, %v1094
        %v1139 = vpack.c.b16 %v1099, %v1095
        %v1140 = vpack.c.b16 %v1104, %v1100
        %v1141 = vpack.c.b16 %v1105, %v1101
        %v1142 = vpack.c.b16 %v1106, %v1102
        %v1143 = vpack.c.b16 %v1107, %v1103
        %v1144 = vpack.c.b16 %v1112, %v1108
        %v1145 = vpack.c.b16 %v1113, %v1109
        %v1146 = vpack.c.b16 %v1114, %v1110
        %v1147 = vpack.c.b16 %v1115, %v1111
        %1180 = vmatprep.subr.bf16.mxu0 %v1117
        %1181 = vmatpush1.bf16.msra.mxu0 %v1116
        %1182 = vmatprep.subr.bf16.mxu0 %v1121
        %1183 = vmatpush1.bf16.msra.mxu0 %v1120
        %1184 = vmatprep.subr.bf16.mxu0 %v1125
        %1185 = vmatpush1.bf16.msra.mxu0 %v1124
        %1186 = vmatprep.subr.bf16.mxu0 %v1129
        %1187 = vmatpush1.bf16.msra.mxu0 %v1128
        %1188 = vmatprep.subr.bf16.mxu0 %v1133
        %1189 = vmatpush1.bf16.msra.mxu0 %v1132
        %1190 = vmatprep.subr.bf16.mxu0 %v1137
        %1191 = vmatpush1.bf16.msra.mxu0 %v1136
        %1192 = vmatprep.subr.bf16.mxu0 %v1141
        %1193 = vmatpush1.bf16.msra.mxu0 %v1140
        %1194 = vmatprep.subr.bf16.mxu0 %v1145
        %1195 = vmatpush1.bf16.msra.mxu0 %v1144
        %1196 = vmatprep.subr.bf16.mxu0 0
        %1197 = vmatpush1.bf16.msra.mxu0 0
        %1198 = vmatprep.subr.bf16.mxu0 0
        %1199 = vmatpush1.bf16.msra.mxu0 0
        %1200 = vmatprep.subr.bf16.mxu0 0
        %1201 = vmatpush1.bf16.msra.mxu0 0
        %1202 = vmatprep.subr.bf16.mxu0 0
        %1203 = vmatpush1.bf16.msra.mxu0 0
        %1204 = vmatprep.subr.bf16.mxu0 0
        %1205 = vmatpush1.bf16.msra.mxu0 0
        %1206 = vmatprep.subr.bf16.mxu0 0
        %1207 = vmatpush1.bf16.msra.mxu0 0
        %1208 = vmatprep.subr.bf16.mxu0 0
        %1209 = vmatpush1.bf16.msra.mxu0 0
        %1210 = vmatprep.subr.bf16.mxu0 0
        %1211 = vmatpush1.bf16.msra.mxu0 0
        %1212 = vmatprep.mubr.bf16.mxu0 0
        %1213 = vmatmul.mubr.bf16.gmra.mrb[0].mxu0 %v1010
        %v1214 = vpop.f32.mrb[0].mxu0
        %v1215 = vadd.f32 0.0, %v1214
        %v1216 = vpop.f32.mrb[0].mxu0
        %v1217 = vadd.f32 0.0, %v1216
        %v1218 = vpop.f32.mrb[0].mxu0
        %v1219 = vadd.f32 0.0, %v1218
        %v1220 = vpop.f32.mrb[0].mxu0
        %v1221 = vadd.f32 0.0, %v1220
        %1222 = vmatprep.mubr.bf16.mxu0 0
        %1223 = vmatmul.mubr.bf16.gmra.mrb[0].mxu0 %v1011
        %v1224 = vpop.f32.mrb[0].mxu0
        %v1225 = vadd.f32 0.0, %v1224
        %v1226 = vpop.f32.mrb[0].mxu0
        %v1227 = vadd.f32 0.0, %v1226
        %v1228 = vpop.f32.mrb[0].mxu0
        %v1229 = vadd.f32 0.0, %v1228
        %v1230 = vpop.f32.mrb[0].mxu0
        %v1231 = vadd.f32 0.0, %v1230
        %1232 = vmatprep.mubr.bf16.mxu0 0
        %1233 = vmatmul.mubr.bf16.gmra.mrb[0].mxu0 %v1012
        %v1234 = vpop.f32.mrb[0].mxu0
        %v1235 = vadd.f32 0.0, %v1234
        %v1236 = vpop.f32.mrb[0].mxu0
        %v1237 = vadd.f32 0.0, %v1236
        %v1238 = vpop.f32.mrb[0].mxu0
        %v1239 = vadd.f32 0.0, %v1238
        %v1240 = vpop.f32.mrb[0].mxu0
        %v1241 = vadd.f32 0.0, %v1240
        %1242 = vmatprep.mubr.bf16.mxu0 0
        %1243 = vmatmul.mubr.bf16.gmra.mrb[0].mxu0 %v1013
        %v1244 = vpop.f32.mrb[0].mxu0
        %v1245 = vadd.f32 0.0, %v1244
        %v1246 = vpop.f32.mrb[0].mxu0
        %v1247 = vadd.f32 0.0, %v1246
        %v1248 = vpop.f32.mrb[0].mxu0
        %v1249 = vadd.f32 0.0, %v1248
        %v1250 = vpop.f32.mrb[0].mxu0
        %v1251 = vadd.f32 0.0, %v1250
        %1252 = vmatprep.mubr.bf16.mxu0 0
        %1253 = vmatmul.mubr.bf16.gmra.mrb[0].mxu0 %v1014
        %v1254 = vpop.f32.mrb[0].mxu0
        %v1255 = vadd.f32 0.0, %v1254
        %v1256 = vpop.f32.mrb[0].mxu0
        %v1257 = vadd.f32 0.0, %v1256
        %v1258 = vpop.f32.mrb[0].mxu0
        %v1259 = vadd.f32 0.0, %v1258
        %v1260 = vpop.f32.mrb[0].mxu0
        %v1261 = vadd.f32 0.0, %v1260
        %1262 = vmatprep.mubr.bf16.mxu0 0
        %1263 = vmatmul.mubr.bf16.gmra.mrb[0].mxu0 %v1015
        %v1264 = vpop.f32.mrb[0].mxu0
        %v1265 = vadd.f32 0.0, %v1264
        %v1266 = vpop.f32.mrb[0].mxu0
        %v1267 = vadd.f32 0.0, %v1266
        %v1268 = vpop.f32.mrb[0].mxu0
        %v1269 = vadd.f32 0.0, %v1268
        %v1270 = vpop.f32.mrb[0].mxu0
        %v1271 = vadd.f32 0.0, %v1270
        %1272 = vmatprep.mubr.bf16.mxu0 0
        %1273 = vmatmul.mubr.bf16.gmra.mrb[0].mxu0 %v1016
        %v1274 = vpop.f32.mrb[0].mxu0
        %v1275 = vadd.f32 0.0, %v1274
        %v1276 = vpop.f32.mrb[0].mxu0
        %v1277 = vadd.f32 0.0, %v1276
        %v1278 = vpop.f32.mrb[0].mxu0
        %v1279 = vadd.f32 0.0, %v1278
        %v1280 = vpop.f32.mrb[0].mxu0
        %v1281 = vadd.f32 0.0, %v1280
        %1282 = vmatprep.mubr.bf16.mxu0 0
        %1283 = vmatmul.mubr.bf16.gmra.mrb[0].mxu0 %v1017
        %v1284 = vpop.f32.mrb[0].mxu0
        %v1285 = vadd.f32 0.0, %v1284
        %v1286 = vpop.f32.mrb[0].mxu0
        %v1287 = vadd.f32 0.0, %v1286
        %v1288 = vpop.f32.mrb[0].mxu0
        %v1289 = vadd.f32 0.0, %v1288
        %v1290 = vpop.f32.mrb[0].mxu0
        %v1291 = vadd.f32 0.0, %v1290
        %1292 = vmatprep.mubr.bf16.mxu0 0
        %1293 = vmatmul.mubr.bf16.gmra.mrb[0].mxu0 %v1018
        %v1294 = vpop.f32.mrb[0].mxu0
        %v1295 = vadd.f32 0.0, %v1294
        %v1296 = vpop.f32.mrb[0].mxu0
        %v1297 = vadd.f32 0.0, %v1296
        %v1298 = vpop.f32.mrb[0].mxu0
        %v1299 = vadd.f32 0.0, %v1298
        %v1300 = vpop.f32.mrb[0].mxu0
        %v1301 = vadd.f32 0.0, %v1300
        %1302 = vmatprep.mubr.bf16.mxu0 0
        %1303 = vmatmul.mubr.bf16.gmra.mrb[0].mxu0 %v1019
        %v1304 = vpop.f32.mrb[0].mxu0
        %v1305 = vadd.f32 0.0, %v1304
        %v1306 = vpop.f32.mrb[0].mxu0
        %v1307 = vadd.f32 0.0, %v1306
        %v1308 = vpop.f32.mrb[0].mxu0
        %v1309 = vpop.f32.mrb[0].mxu0
        %1310 = vdwg.mxu0
        %1311 = vmatprep.subr.bf16.mxu0 %v1119
        %1312 = vmatpush1.bf16.msra.mxu0 %v1118
        %1313 = vmatprep.subr.bf16.mxu0 %v1123
        %1314 = vmatpush1.bf16.msra.mxu0 %v1122
        %1315 = vmatprep.subr.bf16.mxu0 %v1127
        %1316 = vmatpush1.bf16.msra.mxu0 %v1126
        %1317 = vmatprep.subr.bf16.mxu0 %v1131
        %1318 = vmatpush1.bf16.msra.mxu0 %v1130
        %1319 = vmatprep.subr.bf16.mxu0 %v1135
        %1320 = vmatpush1.bf16.msra.mxu0 %v1134
        %1321 = vmatprep.subr.bf16.mxu0 %v1139
        %1322 = vmatpush1.bf16.msra.mxu0 %v1138
        %1323 = vmatprep.subr.bf16.mxu0 %v1143
        %1324 = vmatpush1.bf16.msra.mxu0 %v1142
        %1325 = vmatprep.subr.bf16.mxu0 %v1147
        %1326 = vmatpush1.bf16.msra.mxu0 %v1146
        %1327 = vmatprep.subr.bf16.mxu0 0
        %1328 = vmatpush1.bf16.msra.mxu0 0
        %1329 = vmatprep.subr.bf16.mxu0 0
        %1330 = vmatpush1.bf16.msra.mxu0 0
        %1331 = vmatprep.subr.bf16.mxu0 0
        %1332 = vmatpush1.bf16.msra.mxu0 0
        %1333 = vmatprep.subr.bf16.mxu0 0
        %1334 = vmatpush1.bf16.msra.mxu0 0
        %1335 = vmatprep.subr.bf16.mxu0 0
        %1336 = vmatpush1.bf16.msra.mxu0 0
        %1337 = vmatprep.subr.bf16.mxu0 0
        %1338 = vmatpush1.bf16.msra.mxu0 0
        %1339 = vmatprep.subr.bf16.mxu0 0
        %1340 = vmatpush1.bf16.msra.mxu0 0
        %1341 = vmatprep.subr.bf16.mxu0 0
        %1342 = vmatpush1.bf16.msra.mxu0 0
        %1343 = vmatprep.mubr.bf16.mxu0 0
        %1344 = vmatmul.mubr.bf16.gmra.mrb[0].mxu0 %v1010
        %v1345 = vpop.f32.mrb[0].mxu0
        %v1346 = vadd.f32 0.0, %v1345
        %v1347 = vpop.f32.mrb[0].mxu0
        %v1348 = vadd.f32 0.0, %v1347
        %v1349 = vpop.f32.mrb[0].mxu0
        %v1350 = vadd.f32 0.0, %v1349
        %v1351 = vpop.f32.mrb[0].mxu0
        %v1352 = vadd.f32 0.0, %v1351
        %1353 = vmatprep.mubr.bf16.mxu0 0
        %1354 = vmatmul.mubr.bf16.gmra.mrb[0].mxu0 %v1011
        %v1355 = vpop.f32.mrb[0].mxu0
        %v1356 = vadd.f32 0.0, %v1355
        %v1357 = vpop.f32.mrb[0].mxu0
        %v1358 = vadd.f32 0.0, %v1357
        %v1359 = vpop.f32.mrb[0].mxu0
        %v1360 = vadd.f32 0.0, %v1359
        %v1361 = vpop.f32.mrb[0].mxu0
        %v1362 = vadd.f32 0.0, %v1361
        %1363 = vmatprep.mubr.bf16.mxu0 0
        %1364 = vmatmul.mubr.bf16.gmra.mrb[0].mxu0 %v1012
        %v1365 = vpop.f32.mrb[0].mxu0
        %v1366 = vadd.f32 0.0, %v1365
        %v1367 = vpop.f32.mrb[0].mxu0
        %v1368 = vadd.f32 0.0, %v1367
        %v1369 = vpop.f32.mrb[0].mxu0
        %v1370 = vadd.f32 0.0, %v1369
        %v1371 = vpop.f32.mrb[0].mxu0
        %v1372 = vadd.f32 0.0, %v1371
        %1373 = vmatprep.mubr.bf16.mxu0 0
        %1374 = vmatmul.mubr.bf16.gmra.mrb[0].mxu0 %v1013
        %v1375 = vpop.f32.mrb[0].mxu0
        %v1376 = vadd.f32 0.0, %v1375
        %v1377 = vpop.f32.mrb[0].mxu0
        %v1378 = vadd.f32 0.0, %v1377
        %v1379 = vpop.f32.mrb[0].mxu0
        %v1380 = vadd.f32 0.0, %v1379
        %v1381 = vpop.f32.mrb[0].mxu0
        %v1382 = vadd.f32 0.0, %v1381
        %1383 = vmatprep.mubr.bf16.mxu0 0
        %1384 = vmatmul.mubr.bf16.gmra.mrb[0].mxu0 %v1014
        %v1385 = vpop.f32.mrb[0].mxu0
        %v1386 = vadd.f32 0.0, %v1385
        %v1387 = vpop.f32.mrb[0].mxu0
        %v1388 = vadd.f32 0.0, %v1387
        %v1389 = vpop.f32.mrb[0].mxu0
        %v1390 = vadd.f32 0.0, %v1389
        %v1391 = vpop.f32.mrb[0].mxu0
        %v1392 = vadd.f32 0.0, %v1391
        %1393 = vmatprep.mubr.bf16.mxu0 0
        %1394 = vmatmul.mubr.bf16.gmra.mrb[0].mxu0 %v1015
        %v1395 = vpop.f32.mrb[0].mxu0
        %v1396 = vadd.f32 0.0, %v1395
        %v1397 = vpop.f32.mrb[0].mxu0
        %v1398 = vadd.f32 0.0, %v1397
        %v1399 = vpop.f32.mrb[0].mxu0
        %v1400 = vadd.f32 0.0, %v1399
        %v1401 = vpop.f32.mrb[0].mxu0
        %v1402 = vadd.f32 0.0, %v1401
        %1403 = vmatprep.mubr.bf16.mxu0 0
        %1404 = vmatmul.mubr.bf16.gmra.mrb[0].mxu0 %v1016
        %v1405 = vpop.f32.mrb[0].mxu0
        %v1406 = vadd.f32 0.0, %v1405
        %v1407 = vpop.f32.mrb[0].mxu0
        %v1408 = vadd.f32 0.0, %v1407
        %v1409 = vpop.f32.mrb[0].mxu0
        %v1410 = vadd.f32 0.0, %v1409
        %v1411 = vpop.f32.mrb[0].mxu0
        %v1412 = vadd.f32 0.0, %v1411
        %1413 = vmatprep.mubr.bf16.mxu0 0
        %1414 = vmatmul.mubr.bf16.gmra.mrb[0].mxu0 %v1017
        %v1415 = vpop.f32.mrb[0].mxu0
        %v1416 = vadd.f32 0.0, %v1415
        %v1417 = vpop.f32.mrb[0].mxu0
        %v1418 = vadd.f32 0.0, %v1417
        %v1419 = vpop.f32.mrb[0].mxu0
        %v1420 = vadd.f32 0.0, %v1419
        %v1421 = vpop.f32.mrb[0].mxu0
        %v1422 = vadd.f32 0.0, %v1421
        %1423 = vmatprep.mubr.bf16.mxu0 0
        %1424 = vmatmul.mubr.bf16.gmra.mrb[0].mxu0 %v1018
        %v1425 = vpop.f32.mrb[0].mxu0
        %v1426 = vadd.f32 0.0, %v1425
        %v1427 = vpop.f32.mrb[0].mxu0
        %v1428 = vadd.f32 0.0, %v1427
        %v1429 = vpop.f32.mrb[0].mxu0
        %v1430 = vadd.f32 0.0, %v1429
        %v1431 = vpop.f32.mrb[0].mxu0
        %v1432 = vadd.f32 0.0, %v1431
        %1433 = vmatprep.mubr.bf16.mxu0 0
        %1434 = vmatmul.mubr.bf16.gmra.mrb[0].mxu0 %v1019
        %v1435 = vpop.f32.mrb[0].mxu0
        %v1436 = vadd.f32 0.0, %v1435
        %v1437 = vpop.f32.mrb[0].mxu0
        %v1438 = vadd.f32 0.0, %v1437
        %v1439 = vpop.f32.mrb[0].mxu0
        %v1440 = vpop.f32.mrb[0].mxu0
        %1441 = vdwg.mxu0
        %v1442 = vadd.f32 %v459, %v1215
        %v1443 = vadd.f32 %v460, %v1217
        %v1444 = vadd.f32 %v461, %v1346
        %v1445 = vadd.f32 %v462, %v1348
        %v1446 = vadd.f32 %v463, %v1219
        %v1447 = vadd.f32 %v464, %v1221
        %v1448 = vadd.f32 %v465, %v1350
        %v1449 = vadd.f32 %v466, %v1352
        %v1450 = vadd.f32 %v467, %v1225
        %v1451 = vadd.f32 %v468, %v1227
        %v1452 = vadd.f32 %v469, %v1356
        %v1453 = vadd.f32 %v470, %v1358
        %v1454 = vadd.f32 %v471, %v1229
        %v1455 = vadd.f32 %v472, %v1231
        %v1456 = vadd.f32 %v473, %v1360
        %v1457 = vadd.f32 %v474, %v1362
        %v1458 = vadd.f32 %v475, %v1235
        %v1459 = vadd.f32 %v476, %v1237
        %v1460 = vadd.f32 %v477, %v1366
        %v1461 = vadd.f32 %v478, %v1368
        %v1462 = vadd.f32 %v479, %v1239
        %v1463 = vadd.f32 %v480, %v1241
        %v1464 = vadd.f32 %v481, %v1370
        %v1465 = vadd.f32 %v482, %v1372
        %v1466 = vadd.f32 %v483, %v1245
        %v1467 = vadd.f32 %v484, %v1247
        %v1468 = vadd.f32 %v485, %v1376
        %v1469 = vadd.f32 %v486, %v1378
        %v1470 = vadd.f32 %v487, %v1249
        %v1471 = vadd.f32 %v488, %v1251
        %v1472 = vadd.f32 %v489, %v1380
        %v1473 = vadd.f32 %v490, %v1382
        %v1474 = vadd.f32 %v491, %v1255
        %v1475 = vadd.f32 %v492, %v1257
        %v1476 = vadd.f32 %v493, %v1386
        %v1477 = vadd.f32 %v494, %v1388
        %v1478 = vadd.f32 %v495, %v1259
        %v1479 = vadd.f32 %v496, %v1261
        %v1480 = vadd.f32 %v497, %v1390
        %v1481 = vadd.f32 %v498, %v1392
        %v1482 = vadd.f32 %v499, %v1265
        %v1483 = vadd.f32 %v500, %v1267
        %v1484 = vadd.f32 %v501, %v1396
        %v1485 = vadd.f32 %v502, %v1398
        %v1486 = vadd.f32 %v503, %v1269
        %v1487 = vadd.f32 %v504, %v1271
        %v1488 = vadd.f32 %v505, %v1400
        %v1489 = vadd.f32 %v506, %v1402
        %v1490 = vadd.f32 %v507, %v1275
        %v1491 = vadd.f32 %v508, %v1277
        %v1492 = vadd.f32 %v509, %v1406
        %v1493 = vadd.f32 %v510, %v1408
        %v1494 = vadd.f32 %v511, %v1279
        %v1495 = vadd.f32 %v512, %v1281
        %v1496 = vadd.f32 %v513, %v1410
        %v1497 = vadd.f32 %v514, %v1412
        %v1498 = vadd.f32 %v515, %v1285
        %v1499 = vadd.f32 %v516, %v1287
        %v1500 = vadd.f32 %v517, %v1416
        %v1501 = vadd.f32 %v518, %v1418
        %v1502 = vadd.f32 %v519, %v1289
        %v1503 = vadd.f32 %v520, %v1291
        %v1504 = vadd.f32 %v521, %v1420
        %v1505 = vadd.f32 %v522, %v1422
        %v1506 = vadd.f32 %v523, %v1295
        %v1507 = vadd.f32 %v524, %v1297
        %v1508 = vadd.f32 %v525, %v1426
        %v1509 = vadd.f32 %v526, %v1428
        %v1510 = vadd.f32 %v527, %v1299
        %v1511 = vadd.f32 %v528, %v1301
        %v1512 = vadd.f32 %v529, %v1430
        %v1513 = vadd.f32 %v530, %v1432
        %v1514 = vadd.f32 %v531, %v1305
        %v1515 = vadd.f32 %v532, %v1307
        %v1516 = vadd.f32 %v533, %v1436
        %v1517 = vadd.f32 %v534, %v1438
        %1518 = vst [vmem:[%s319] sm:$0xff] %v1442
        %1519 = vst [vmem:[%s319 + $0x8] sm:$0xff] %v1443
        %1520 = vst [vmem:[%s319 + $0x10] sm:$0xff] %v1444
        %1521 = vst [vmem:[%s319 + $0x18] sm:$0xff] %v1445
        %1522 = vst [vmem:[%s319 + $0x20] sm:$0xff] %v1446
        %1523 = vst [vmem:[%s319 + $0x28] sm:$0xff] %v1447
        %1524 = vst [vmem:[%s319 + $0x30] sm:$0xff] %v1448
        %1525 = vst [vmem:[%s319 + $0x38] sm:$0xff] %v1449
        %1526 = vst [vmem:[%s319 + $0x40] sm:$0xff] %v1450
        %1527 = vst [vmem:[%s319 + $0x48] sm:$0xff] %v1451
        %1528 = vst [vmem:[%s319 + $0x50] sm:$0xff] %v1452
        %1529 = vst [vmem:[%s319 + $0x58] sm:$0xff] %v1453
        %1530 = vst [vmem:[%s319 + $0x60] sm:$0xff] %v1454
        %1531 = vst [vmem:[%s319 + $0x68] sm:$0xff] %v1455
        %1532 = vst [vmem:[%s319 + $0x70] sm:$0xff] %v1456
        %1533 = vst [vmem:[%s319 + $0x78] sm:$0xff] %v1457
        %1534 = vst [vmem:[%s319 + $0x80] sm:$0xff] %v1458
        %1535 = vst [vmem:[%s319 + $0x88] sm:$0xff] %v1459
        %1536 = vst [vmem:[%s319 + $0x90] sm:$0xff] %v1460
        %1537 = vst [vmem:[%s319 + $0x98] sm:$0xff] %v1461
        %1538 = vst [vmem:[%s319 + $0xa0] sm:$0xff] %v1462
        %1539 = vst [vmem:[%s319 + $0xa8] sm:$0xff] %v1463
        %1540 = vst [vmem:[%s319 + $0xb0] sm:$0xff] %v1464
        %1541 = vst [vmem:[%s319 + $0xb8] sm:$0xff] %v1465
        %1542 = vst [vmem:[%s319 + $0xc0] sm:$0xff] %v1466
        %1543 = vst [vmem:[%s319 + $0xc8] sm:$0xff] %v1467
        %1544 = vst [vmem:[%s319 + $0xd0] sm:$0xff] %v1468
        %1545 = vst [vmem:[%s319 + $0xd8] sm:$0xff] %v1469
        %1546 = vst [vmem:[%s319 + $0xe0] sm:$0xff] %v1470
        %1547 = vst [vmem:[%s319 + $0xe8] sm:$0xff] %v1471
        %1548 = vst [vmem:[%s319 + $0xf0] sm:$0xff] %v1472
        %1549 = vst [vmem:[%s319 + $0xf8] sm:$0xff] %v1473
        %1550 = vst [vmem:[%s319 + $0x100] sm:$0xff] %v1474
        %1551 = vst [vmem:[%s319 + $0x108] sm:$0xff] %v1475
        %1552 = vst [vmem:[%s319 + $0x110] sm:$0xff] %v1476
        %1553 = vst [vmem:[%s319 + $0x118] sm:$0xff] %v1477
        %1554 = vst [vmem:[%s319 + $0x120] sm:$0xff] %v1478
        %1555 = vst [vmem:[%s319 + $0x128] sm:$0xff] %v1479
        %1556 = vst [vmem:[%s319 + $0x130] sm:$0xff] %v1480
        %1557 = vst [vmem:[%s319 + $0x138] sm:$0xff] %v1481
        %1558 = vst [vmem:[%s319 + $0x140] sm:$0xff] %v1482
        %1559 = vst [vmem:[%s319 + $0x148] sm:$0xff] %v1483
        %1560 = vst [vmem:[%s319 + $0x150] sm:$0xff] %v1484
        %1561 = vst [vmem:[%s319 + $0x158] sm:$0xff] %v1485
        %1562 = vst [vmem:[%s319 + $0x160] sm:$0xff] %v1486
        %1563 = vst [vmem:[%s319 + $0x168] sm:$0xff] %v1487
        %1564 = vst [vmem:[%s319 + $0x170] sm:$0xff] %v1488
        %1565 = vst [vmem:[%s319 + $0x178] sm:$0xff] %v1489
        %1566 = vst [vmem:[%s319 + $0x180] sm:$0xff] %v1490
        %1567 = vst [vmem:[%s319 + $0x188] sm:$0xff] %v1491
        %1568 = vst [vmem:[%s319 + $0x190] sm:$0xff] %v1492
        %1569 = vst [vmem:[%s319 + $0x198] sm:$0xff] %v1493
        %1570 = vst [vmem:[%s319 + $0x1a0] sm:$0xff] %v1494
        %1571 = vst [vmem:[%s319 + $0x1a8] sm:$0xff] %v1495
        %1572 = vst [vmem:[%s319 + $0x1b0] sm:$0xff] %v1496
        %1573 = vst [vmem:[%s319 + $0x1b8] sm:$0xff] %v1497
        %1574 = vst [vmem:[%s319 + $0x1c0] sm:$0xff] %v1498
        %1575 = vst [vmem:[%s319 + $0x1c8] sm:$0xff] %v1499
        %1576 = vst [vmem:[%s319 + $0x1d0] sm:$0xff] %v1500
        %1577 = vst [vmem:[%s319 + $0x1d8] sm:$0xff] %v1501
        %1578 = vst [vmem:[%s319 + $0x1e0] sm:$0xff] %v1502
        %1579 = vst [vmem:[%s319 + $0x1e8] sm:$0xff] %v1503
        %1580 = vst [vmem:[%s319 + $0x1f0] sm:$0xff] %v1504
        %1581 = vst [vmem:[%s319 + $0x1f8] sm:$0xff] %v1505
        %1582 = vst [vmem:[%s319 + $0x200] sm:$0xff] %v1506
        %1583 = vst [vmem:[%s319 + $0x208] sm:$0xff] %v1507
        %1584 = vst [vmem:[%s319 + $0x210] sm:$0xff] %v1508
        %1585 = vst [vmem:[%s319 + $0x218] sm:$0xff] %v1509
        %1586 = vst [vmem:[%s319 + $0x220] sm:$0xff] %v1510
        %1587 = vst [vmem:[%s319 + $0x228] sm:$0xff] %v1511
        %1588 = vst [vmem:[%s319 + $0x230] sm:$0xff] %v1512
        %1589 = vst [vmem:[%s319 + $0x238] sm:$0xff] %v1513
        %1590 = vst [vmem:[%s319 + $0x240] sm:$0xff] %v1514
        %1591 = vst [vmem:[%s319 + $0x248] sm:$0xff] %v1515
        %1592 = vst [vmem:[%s319 + $0x250] sm:$0xff] %v1516
        %1593 = vst [vmem:[%s319 + $0x258] sm:$0xff] %v1517
        %v1594 = vld [vmem:[%s342] sm:$0xff]
        %v1595 = vld [vmem:[%s342 + $0x8] sm:$0xff]
        %v1596 = vld [vmem:[%s342 + $0x10] sm:$0xff]
        %v1597 = vld [vmem:[%s342 + $0x18] sm:$0xff]
        %v1598 = vld [vmem:[%s342 + $0x20] sm:$0xff]
        %v1599 = vld [vmem:[%s342 + $0x28] sm:$0xff]
        %v1600 = vld [vmem:[%s342 + $0x30] sm:$0xff]
        %v1601 = vld [vmem:[%s342 + $0x38] sm:$0xff]
        %v1602 = vld [vmem:[%s342 + $0x40] sm:$0xff]
        %v1603 = vld [vmem:[%s342 + $0x48] sm:$0xff]
        %v1604 = vld [vmem:[%s342 + $0x50] sm:$0xff]
        %v1605 = vld [vmem:[%s342 + $0x58] sm:$0xff]
        %v1606 = vld [vmem:[%s342 + $0x60] sm:$0xff]
        %v1607 = vld [vmem:[%s342 + $0x68] sm:$0xff]
        %v1608 = vld [vmem:[%s342 + $0x70] sm:$0xff]
        %v1609 = vld [vmem:[%s342 + $0x78] sm:$0xff]
        %v1610 = vld [vmem:[%s342 + $0x80] sm:$0xff]
        %v1611 = vld [vmem:[%s342 + $0x88] sm:$0xff]
        %v1612 = vld [vmem:[%s342 + $0x90] sm:$0xff]
        %v1613 = vld [vmem:[%s342 + $0x98] sm:$0xff]
        %v1614 = vld [vmem:[%s342 + $0xa0] sm:$0xff]
        %v1615 = vld [vmem:[%s342 + $0xa8] sm:$0xff]
        %v1616 = vld [vmem:[%s342 + $0xb0] sm:$0xff]
        %v1617 = vld [vmem:[%s342 + $0xb8] sm:$0xff]
        %v1618 = vld [vmem:[%s342 + $0xc0] sm:$0xff]
        %v1619 = vld [vmem:[%s342 + $0xc8] sm:$0xff]
        %v1620 = vld [vmem:[%s342 + $0xd0] sm:$0xff]
        %v1621 = vld [vmem:[%s342 + $0xd8] sm:$0xff]
        %v1622 = vld [vmem:[%s342 + $0xe0] sm:$0xff]
        %v1623 = vld [vmem:[%s342 + $0xe8] sm:$0xff]
        %v1624 = vld [vmem:[%s342 + $0xf0] sm:$0xff]
        %v1625 = vld [vmem:[%s342 + $0xf8] sm:$0xff]
        %v1626 = vpack.c.bf16 %v1598, %v1594
        %v1627 = vpack.c.bf16 %v1599, %v1595
        %v1628 = vpack.c.bf16 %v1600, %v1596
        %v1629 = vpack.c.bf16 %v1601, %v1597
        %v1630 = vpack.c.bf16 %v1606, %v1602
        %v1631 = vpack.c.bf16 %v1607, %v1603
        %v1632 = vpack.c.bf16 %v1608, %v1604
        %v1633 = vpack.c.bf16 %v1609, %v1605
        %v1634 = vpack.c.bf16 %v1614, %v1610
        %v1635 = vpack.c.bf16 %v1615, %v1611
        %v1636 = vpack.c.bf16 %v1616, %v1612
        %v1637 = vpack.c.bf16 %v1617, %v1613
        %v1638 = vpack.c.bf16 %v1622, %v1618
        %v1639 = vpack.c.bf16 %v1623, %v1619
        %v1640 = vpack.c.bf16 %v1624, %v1620
        %v1641 = vpack.c.bf16 %v1625, %v1621
        %1642 = vmatprep.subr.bf16.mxu0 0
        %1643 = vmatpush1.bf16.msra.mxu0 %v703
        %1644 = vmatprep.subr.bf16.mxu0 0
        %1645 = vmatpush1.bf16.msra.mxu0 %v704
        %1646 = vmatprep.subr.bf16.mxu0 0
        %1647 = vmatpush1.bf16.msra.mxu0 %v705
        %1648 = vmatprep.subr.bf16.mxu0 0
        %1649 = vmatpush1.bf16.msra.mxu0 %v706
        %1650 = vmatprep.subr.bf16.mxu0 0
        %1651 = vmatpush1.bf16.msra.mxu0 %v707
        %1652 = vmatprep.subr.bf16.mxu0 0
        %1653 = vmatpush1.bf16.msra.mxu0 %v708
        %1654 = vmatprep.subr.bf16.mxu0 0
        %1655 = vmatpush1.bf16.msra.mxu0 %v709
        %1656 = vmatprep.subr.bf16.mxu0 0
        %1657 = vmatpush1.bf16.msra.mxu0 %v710
        %1658 = vmatprep.subr.bf16.mxu0 0
        %1659 = vmatpush1.bf16.msra.mxu0 %v711
        %1660 = vmatprep.subr.bf16.mxu0 0
        %1661 = vmatpush1.bf16.msra.mxu0 %v712
        %1662 = vmatprep.subr.bf16.mxu0 0
        %1663 = vmatpush1.bf16.msra.mxu0 %v713
        %1664 = vmatprep.subr.bf16.mxu0 0
        %1665 = vmatpush1.bf16.msra.mxu0 %v714
        %1666 = vmatprep.subr.bf16.mxu0 0
        %1667 = vmatpush1.bf16.msra.mxu0 %v715
        %1668 = vmatprep.subr.bf16.mxu0 0
        %1669 = vmatpush1.bf16.msra.mxu0 %v716
        %1670 = vmatprep.subr.bf16.mxu0 0
        %1671 = vmatpush1.bf16.msra.mxu0 %v717
        %1672 = vmatprep.subr.bf16.mxu0 0
        %1673 = vmatpush1.bf16.msra.mxu0 %v718
        %1674 = vmatprep.mubr.bf16.mxu0 %v1627
        %1675 = vmatmul.mubr.bf16.gmra.mrb[0].mxu0 %v1626
        %v1676 = vpop.f32.mrb[0].mxu0
        %v1677 = vadd.f32 0.0, %v1676
        %v1678 = vpop.f32.mrb[0].mxu0
        %v1679 = vpop.f32.mrb[0].mxu0
        %v1680 = vadd.f32 0.0, %v1679
        %v1681 = vpop.f32.mrb[0].mxu0
        %1682 = vmatprep.mubr.bf16.mxu0 %v1631
        %1683 = vmatmul.mubr.bf16.gmra.mrb[0].mxu0 %v1630
        %v1684 = vpop.f32.mrb[0].mxu0
        %v1685 = vadd.f32 0.0, %v1684
        %v1686 = vpop.f32.mrb[0].mxu0
        %v1687 = vpop.f32.mrb[0].mxu0
        %v1688 = vadd.f32 0.0, %v1687
        %v1689 = vpop.f32.mrb[0].mxu0
        %1690 = vmatprep.mubr.bf16.mxu0 %v1635
        %1691 = vmatmul.mubr.bf16.gmra.mrb[0].mxu0 %v1634
        %v1692 = vpop.f32.mrb[0].mxu0
        %v1693 = vadd.f32 0.0, %v1692
        %v1694 = vpop.f32.mrb[0].mxu0
        %v1695 = vpop.f32.mrb[0].mxu0
        %v1696 = vadd.f32 0.0, %v1695
        %v1697 = vpop.f32.mrb[0].mxu0
        %1698 = vmatprep.mubr.bf16.mxu0 %v1639
        %1699 = vmatmul.mubr.bf16.gmra.mrb[0].mxu0 %v1638
        %v1700 = vpop.f32.mrb[0].mxu0
        %v1701 = vadd.f32 0.0, %v1700
        %v1702 = vpop.f32.mrb[0].mxu0
        %v1703 = vpop.f32.mrb[0].mxu0
        %v1704 = vadd.f32 0.0, %v1703
        %v1705 = vpop.f32.mrb[0].mxu0
        %1706 = vdwg.mxu0
        %1707 = vmatprep.subr.bf16.mxu0 0
        %1708 = vmatpush1.bf16.msra.mxu0 %v719
        %1709 = vmatprep.subr.bf16.mxu0 0
        %1710 = vmatpush1.bf16.msra.mxu0 %v720
        %1711 = vmatprep.subr.bf16.mxu0 0
        %1712 = vmatpush1.bf16.msra.mxu0 %v721
        %1713 = vmatprep.subr.bf16.mxu0 0
        %1714 = vmatpush1.bf16.msra.mxu0 %v722
        %1715 = vmatprep.subr.bf16.mxu0 0
        %1716 = vmatpush1.bf16.msra.mxu0 %v723
        %1717 = vmatprep.subr.bf16.mxu0 0
        %1718 = vmatpush1.bf16.msra.mxu0 %v724
        %1719 = vmatprep.subr.bf16.mxu0 0
        %1720 = vmatpush1.bf16.msra.mxu0 %v725
        %1721 = vmatprep.subr.bf16.mxu0 0
        %1722 = vmatpush1.bf16.msra.mxu0 %v726
        %1723 = vmatprep.subr.bf16.mxu0 0
        %1724 = vmatpush1.bf16.msra.mxu0 %v727
        %1725 = vmatprep.subr.bf16.mxu0 0
        %1726 = vmatpush1.bf16.msra.mxu0 %v728
        %1727 = vmatprep.subr.bf16.mxu0 0
        %1728 = vmatpush1.bf16.msra.mxu0 %v729
        %1729 = vmatprep.subr.bf16.mxu0 0
        %1730 = vmatpush1.bf16.msra.mxu0 %v730
        %1731 = vmatprep.subr.bf16.mxu0 0
        %1732 = vmatpush1.bf16.msra.mxu0 %v731
        %1733 = vmatprep.subr.bf16.mxu0 0
        %1734 = vmatpush1.bf16.msra.mxu0 %v732
        %1735 = vmatprep.subr.bf16.mxu0 0
        %1736 = vmatpush1.bf16.msra.mxu0 %v733
        %1737 = vmatprep.subr.bf16.mxu0 0
        %1738 = vmatpush1.bf16.msra.mxu0 %v734
        %1739 = vmatprep.mubr.bf16.mxu0 %v1629
        %1740 = vmatmul.mubr.bf16.gmra.mrb[0].mxu0 %v1628
        %v1741 = vpop.f32.mrb[0].mxu0
        %v1742 = vadd.f32 %v1677, %v1741
        %v1743 = vpop.f32.mrb[0].mxu0
        %v1744 = vpop.f32.mrb[0].mxu0
        %v1745 = vadd.f32 %v1680, %v1744
        %v1746 = vpop.f32.mrb[0].mxu0
        %1747 = vmatprep.mubr.bf16.mxu0 %v1633
        %1748 = vmatmul.mubr.bf16.gmra.mrb[0].mxu0 %v1632
        %v1749 = vpop.f32.mrb[0].mxu0
        %v1750 = vadd.f32 %v1685, %v1749
        %v1751 = vpop.f32.mrb[0].mxu0
        %v1752 = vpop.f32.mrb[0].mxu0
        %v1753 = vadd.f32 %v1688, %v1752
        %v1754 = vpop.f32.mrb[0].mxu0
        %1755 = vmatprep.mubr.bf16.mxu0 %v1637
        %1756 = vmatmul.mubr.bf16.gmra.mrb[0].mxu0 %v1636
        %v1757 = vpop.f32.mrb[0].mxu0
        %v1758 = vadd.f32 %v1693, %v1757
        %v1759 = vpop.f32.mrb[0].mxu0
        %v1760 = vpop.f32.mrb[0].mxu0
        %v1761 = vadd.f32 %v1696, %v1760
        %v1762 = vpop.f32.mrb[0].mxu0
        %1763 = vmatprep.mubr.bf16.mxu0 %v1641
        %1764 = vmatmul.mubr.bf16.gmra.mrb[0].mxu0 %v1640
        %v1765 = vpop.f32.mrb[0].mxu0
        %v1766 = vadd.f32 %v1701, %v1765
        %v1767 = vpop.f32.mrb[0].mxu0
        %v1768 = vpop.f32.mrb[0].mxu0
        %v1769 = vadd.f32 %v1704, %v1768
        %v1770 = vpop.f32.mrb[0].mxu0
        %1771 = vdwg.mxu0
        %v1772 = vmax.f32 %v1742, 0.0
        %v1773 = vmax.f32 %v1745, 0.0
        %v1774 = vmax.f32 %v1750, 0.0
        %v1775 = vmax.f32 %v1753, 0.0
        %v1776 = vmax.f32 %v1758, 0.0
        %v1777 = vmax.f32 %v1761, 0.0
        %v1778 = vmax.f32 %v1766, 0.0
        %v1779 = vmax.f32 %v1769, 0.0
        %v1780 = vpack.c.bf16 %v1773, %v1772
        %v1781 = vpack.c.bf16 %v1775, %v1774
        %v1782 = vpack.c.bf16 %v1777, %v1776
        %v1783 = vpack.c.bf16 %v1779, %v1778
        %1784 = vmatprep.subr.bf16.mxu0 %v1117
        %1785 = vmatpush1.bf16.msra.mxu0 %v1116
        %1786 = vmatprep.subr.bf16.mxu0 %v1121
        %1787 = vmatpush1.bf16.msra.mxu0 %v1120
        %1788 = vmatprep.subr.bf16.mxu0 %v1125
        %1789 = vmatpush1.bf16.msra.mxu0 %v1124
        %1790 = vmatprep.subr.bf16.mxu0 %v1129
        %1791 = vmatpush1.bf16.msra.mxu0 %v1128
        %1792 = vmatprep.subr.bf16.mxu0 %v1133
        %1793 = vmatpush1.bf16.msra.mxu0 %v1132
        %1794 = vmatprep.subr.bf16.mxu0 %v1137
        %1795 = vmatpush1.bf16.msra.mxu0 %v1136
        %1796 = vmatprep.subr.bf16.mxu0 %v1141
        %1797 = vmatpush1.bf16.msra.mxu0 %v1140
        %1798 = vmatprep.subr.bf16.mxu0 %v1145
        %1799 = vmatpush1.bf16.msra.mxu0 %v1144
        %1800 = vmatprep.subr.bf16.mxu0 0
        %1801 = vmatpush1.bf16.msra.mxu0 0
        %1802 = vmatprep.subr.bf16.mxu0 0
        %1803 = vmatpush1.bf16.msra.mxu0 0
        %1804 = vmatprep.subr.bf16.mxu0 0
        %1805 = vmatpush1.bf16.msra.mxu0 0
        %1806 = vmatprep.subr.bf16.mxu0 0
        %1807 = vmatpush1.bf16.msra.mxu0 0
        %1808 = vmatprep.subr.bf16.mxu0 0
        %1809 = vmatpush1.bf16.msra.mxu0 0
        %1810 = vmatprep.subr.bf16.mxu0 0
        %1811 = vmatpush1.bf16.msra.mxu0 0
        %1812 = vmatprep.subr.bf16.mxu0 0
        %1813 = vmatpush1.bf16.msra.mxu0 0
        %1814 = vmatprep.subr.bf16.mxu0 0
        %1815 = vmatpush1.bf16.msra.mxu0 0
        %1816 = vmatprep.mubr.bf16.mxu0 0
        %1817 = vmatmul.mubr.bf16.gmra.mrb[0].mxu0 %v1780
        %v1818 = vpop.f32.mrb[0].mxu0
        %v1819 = vadd.f32 0.0, %v1818
        %v1820 = vpop.f32.mrb[0].mxu0
        %v1821 = vadd.f32 0.0, %v1820
        %v1822 = vpop.f32.mrb[0].mxu0
        %v1823 = vadd.f32 0.0, %v1822
        %v1824 = vpop.f32.mrb[0].mxu0
        %v1825 = vadd.f32 0.0, %v1824
        %1826 = vmatprep.mubr.bf16.mxu0 0
        %1827 = vmatmul.mubr.bf16.gmra.mrb[0].mxu0 %v1781
        %v1828 = vpop.f32.mrb[0].mxu0
        %v1829 = vadd.f32 0.0, %v1828
        %v1830 = vpop.f32.mrb[0].mxu0
        %v1831 = vadd.f32 0.0, %v1830
        %v1832 = vpop.f32.mrb[0].mxu0
        %v1833 = vadd.f32 0.0, %v1832
        %v1834 = vpop.f32.mrb[0].mxu0
        %v1835 = vadd.f32 0.0, %v1834
        %1836 = vmatprep.mubr.bf16.mxu0 0
        %1837 = vmatmul.mubr.bf16.gmra.mrb[0].mxu0 %v1782
        %v1838 = vpop.f32.mrb[0].mxu0
        %v1839 = vadd.f32 0.0, %v1838
        %v1840 = vpop.f32.mrb[0].mxu0
        %v1841 = vadd.f32 0.0, %v1840
        %v1842 = vpop.f32.mrb[0].mxu0
        %v1843 = vadd.f32 0.0, %v1842
        %v1844 = vpop.f32.mrb[0].mxu0
        %v1845 = vadd.f32 0.0, %v1844
        %1846 = vmatprep.mubr.bf16.mxu0 0
        %1847 = vmatmul.mubr.bf16.gmra.mrb[0].mxu0 %v1783
        %v1848 = vpop.f32.mrb[0].mxu0
        %v1849 = vadd.f32 0.0, %v1848
        %v1850 = vpop.f32.mrb[0].mxu0
        %v1851 = vadd.f32 0.0, %v1850
        %v1852 = vpop.f32.mrb[0].mxu0
        %v1853 = vadd.f32 0.0, %v1852
        %v1854 = vpop.f32.mrb[0].mxu0
        %v1855 = vadd.f32 0.0, %v1854
        %1856 = vdwg.mxu0
        %1857 = vmatprep.subr.bf16.mxu0 %v1119
        %1858 = vmatpush1.bf16.msra.mxu0 %v1118
        %1859 = vmatprep.subr.bf16.mxu0 %v1123
        %1860 = vmatpush1.bf16.msra.mxu0 %v1122
        %1861 = vmatprep.subr.bf16.mxu0 %v1127
        %1862 = vmatpush1.bf16.msra.mxu0 %v1126
        %1863 = vmatprep.subr.bf16.mxu0 %v1131
        %1864 = vmatpush1.bf16.msra.mxu0 %v1130
        %1865 = vmatprep.subr.bf16.mxu0 %v1135
        %1866 = vmatpush1.bf16.msra.mxu0 %v1134
        %1867 = vmatprep.subr.bf16.mxu0 %v1139
        %1868 = vmatpush1.bf16.msra.mxu0 %v1138
        %1869 = vmatprep.subr.bf16.mxu0 %v1143
        %1870 = vmatpush1.bf16.msra.mxu0 %v1142
        %1871 = vmatprep.subr.bf16.mxu0 %v1147
        %1872 = vmatpush1.bf16.msra.mxu0 %v1146
        %1873 = vmatprep.subr.bf16.mxu0 0
        %1874 = vmatpush1.bf16.msra.mxu0 0
        %1875 = vmatprep.subr.bf16.mxu0 0
        %1876 = vmatpush1.bf16.msra.mxu0 0
        %1877 = vmatprep.subr.bf16.mxu0 0
        %1878 = vmatpush1.bf16.msra.mxu0 0
        %1879 = vmatprep.subr.bf16.mxu0 0
        %1880 = vmatpush1.bf16.msra.mxu0 0
        %1881 = vmatprep.subr.bf16.mxu0 0
        %1882 = vmatpush1.bf16.msra.mxu0 0
        %1883 = vmatprep.subr.bf16.mxu0 0
        %1884 = vmatpush1.bf16.msra.mxu0 0
        %1885 = vmatprep.subr.bf16.mxu0 0
        %1886 = vmatpush1.bf16.msra.mxu0 0
        %1887 = vmatprep.subr.bf16.mxu0 0
        %1888 = vmatpush1.bf16.msra.mxu0 0
        %1889 = vmatprep.mubr.bf16.mxu0 0
        %1890 = vmatmul.mubr.bf16.gmra.mrb[0].mxu0 %v1780
        %v1891 = vpop.f32.mrb[0].mxu0
        %v1892 = vadd.f32 0.0, %v1891
        %v1893 = vpop.f32.mrb[0].mxu0
        %v1894 = vadd.f32 0.0, %v1893
        %v1895 = vpop.f32.mrb[0].mxu0
        %v1896 = vadd.f32 0.0, %v1895
        %v1897 = vpop.f32.mrb[0].mxu0
        %v1898 = vadd.f32 0.0, %v1897
        %1899 = vmatprep.mubr.bf16.mxu0 0
        %1900 = vmatmul.mubr.bf16.gmra.mrb[0].mxu0 %v1781
        %v1901 = vpop.f32.mrb[0].mxu0
        %v1902 = vadd.f32 0.0, %v1901
        %v1903 = vpop.f32.mrb[0].mxu0
        %v1904 = vadd.f32 0.0, %v1903
        %v1905 = vpop.f32.mrb[0].mxu0
        %v1906 = vadd.f32 0.0, %v1905
        %v1907 = vpop.f32.mrb[0].mxu0
        %v1908 = vadd.f32 0.0, %v1907
        %1909 = vmatprep.mubr.bf16.mxu0 0
        %1910 = vmatmul.mubr.bf16.gmra.mrb[0].mxu0 %v1782
        %v1911 = vpop.f32.mrb[0].mxu0
        %v1912 = vadd.f32 0.0, %v1911
        %v1913 = vpop.f32.mrb[0].mxu0
        %v1914 = vadd.f32 0.0, %v1913
        %v1915 = vpop.f32.mrb[0].mxu0
        %v1916 = vadd.f32 0.0, %v1915
        %v1917 = vpop.f32.mrb[0].mxu0
        %v1918 = vadd.f32 0.0, %v1917
        %1919 = vmatprep.mubr.bf16.mxu0 0
        %1920 = vmatmul.mubr.bf16.gmra.mrb[0].mxu0 %v1783
        %v1921 = vpop.f32.mrb[0].mxu0
        %v1922 = vadd.f32 0.0, %v1921
        %v1923 = vpop.f32.mrb[0].mxu0
        %v1924 = vadd.f32 0.0, %v1923
        %v1925 = vpop.f32.mrb[0].mxu0
        %v1926 = vadd.f32 0.0, %v1925
        %v1927 = vpop.f32.mrb[0].mxu0
        %v1928 = vadd.f32 0.0, %v1927
        %1929 = vdwg.mxu0
        %v1930 = vadd.f32 %v1594, %v1819
        %v1931 = vadd.f32 %v1595, %v1821
        %v1932 = vadd.f32 %v1596, %v1892
        %v1933 = vadd.f32 %v1597, %v1894
        %v1934 = vadd.f32 %v1598, %v1823
        %v1935 = vadd.f32 %v1599, %v1825
        %v1936 = vadd.f32 %v1600, %v1896
        %v1937 = vadd.f32 %v1601, %v1898
        %v1938 = vadd.f32 %v1602, %v1829
        %v1939 = vadd.f32 %v1603, %v1831
        %v1940 = vadd.f32 %v1604, %v1902
        %v1941 = vadd.f32 %v1605, %v1904
        %v1942 = vadd.f32 %v1606, %v1833
        %v1943 = vadd.f32 %v1607, %v1835
        %v1944 = vadd.f32 %v1608, %v1906
        %v1945 = vadd.f32 %v1609, %v1908
        %v1946 = vadd.f32 %v1610, %v1839
        %v1947 = vadd.f32 %v1611, %v1841
        %v1948 = vadd.f32 %v1612, %v1912
        %v1949 = vadd.f32 %v1613, %v1914
        %v1950 = vadd.f32 %v1614, %v1843
        %v1951 = vadd.f32 %v1615, %v1845
        %v1952 = vadd.f32 %v1616, %v1916
        %v1953 = vadd.f32 %v1617, %v1918
        %v1954 = vadd.f32 %v1618, %v1849
        %v1955 = vadd.f32 %v1619, %v1851
        %v1956 = vadd.f32 %v1620, %v1922
        %v1957 = vadd.f32 %v1621, %v1924
        %v1958 = vadd.f32 %v1622, %v1853
        %v1959 = vadd.f32 %v1623, %v1855
        %v1960 = vadd.f32 %v1624, %v1926
        %v1961 = vadd.f32 %v1625, %v1928
        %1962 = vst [vmem:[%s326] sm:$0xff] %v1930
        %1963 = vst [vmem:[%s326 + $0x8] sm:$0xff] %v1931
        %1964 = vst [vmem:[%s326 + $0x10] sm:$0xff] %v1932
        %1965 = vst [vmem:[%s326 + $0x18] sm:$0xff] %v1933
        %1966 = vst [vmem:[%s326 + $0x20] sm:$0xff] %v1934
        %1967 = vst [vmem:[%s326 + $0x28] sm:$0xff] %v1935
        %1968 = vst [vmem:[%s326 + $0x30] sm:$0xff] %v1936
        %1969 = vst [vmem:[%s326 + $0x38] sm:$0xff] %v1937
        %1970 = vst [vmem:[%s326 + $0x40] sm:$0xff] %v1938
        %1971 = vst [vmem:[%s326 + $0x48] sm:$0xff] %v1939
        %1972 = vst [vmem:[%s326 + $0x50] sm:$0xff] %v1940
        %1973 = vst [vmem:[%s326 + $0x58] sm:$0xff] %v1941
        %1974 = vst [vmem:[%s326 + $0x60] sm:$0xff] %v1942
        %1975 = vst [vmem:[%s326 + $0x68] sm:$0xff] %v1943
        %1976 = vst [vmem:[%s326 + $0x70] sm:$0xff] %v1944
        %1977 = vst [vmem:[%s326 + $0x78] sm:$0xff] %v1945
        %1978 = vst [vmem:[%s326 + $0x80] sm:$0xff] %v1946
        %1979 = vst [vmem:[%s326 + $0x88] sm:$0xff] %v1947
        %1980 = vst [vmem:[%s326 + $0x90] sm:$0xff] %v1948
        %1981 = vst [vmem:[%s326 + $0x98] sm:$0xff] %v1949
        %1982 = vst [vmem:[%s326 + $0xa0] sm:$0xff] %v1950
        %1983 = vst [vmem:[%s326 + $0xa8] sm:$0xff] %v1951
        %1984 = vst [vmem:[%s326 + $0xb0] sm:$0xff] %v1952
        %1985 = vst [vmem:[%s326 + $0xb8] sm:$0xff] %v1953
        %1986 = vst [vmem:[%s326 + $0xc0] sm:$0xff] %v1954
        %1987 = vst [vmem:[%s326 + $0xc8] sm:$0xff] %v1955
        %1988 = vst [vmem:[%s326 + $0xd0] sm:$0xff] %v1956
        %1989 = vst [vmem:[%s326 + $0xd8] sm:$0xff] %v1957
        %1990 = vst [vmem:[%s326 + $0xe0] sm:$0xff] %v1958
        %1991 = vst [vmem:[%s326 + $0xe8] sm:$0xff] %v1959
        %1992 = vst [vmem:[%s326 + $0xf0] sm:$0xff] %v1960
        %1993 = vst [vmem:[%s326 + $0xf8] sm:$0xff] %v1961
        %s1994 = sand.u32 %s141, 1
        %s1995 = scalar_lea.sflag [#allocation4], %s1994
        %s1996 = sand.u32 %s141, 1
        %s1997 = smul.addr %s1996, 608
        %s1998 = scalar_lea.vmem [#allocation7], %s1997
        %s1999 = sand.u32 %s171, 1
        %s2000 = scalar_lea.sflag [#allocation9], %s1999
        %s2001 = sand.u32 %s171, 1
        %s2002 = smul.addr %s2001, 256
        %s2003 = scalar_lea.vmem [#allocation8], %s2002
        // Predicated region
        $region45: #{a_call__.1} parent=35 // pred_check
          %p2004 = pneg %p151
        $region46: #{a_call__.1} parent=35 // pred_check_branch
          %2006 = sbr.rel (%p2004) target = $region48
        $region47: #{a_call__.1} parent=35 // pred_region
          %p2007 = scmp.lt.s32.totalorder %s27, 1
          %s2008 = scalar_select %p2007, %s27, 1
          %s2009 = smul.u32 19, %s2008
          %s2011 = ssub.s32 9728, 9728
          %2012 = vsyncadd %s1995, %s2011
          %s2013 = smul.addr %s2009, 4
          %s2014 = smul.addr %s2013, 128
          %s2015 = scalar_lea.hbm %s4, %s2014
          %s2016 = sshll.u32 %s1998, 4
          %s2017 = int_to_ptr.vmem [resolvable:$true] %s2016
          %2022 = dma.vmem_to_hbm [thread:$0]  %s2017, 9728, %s2015, %s1995, 512, 512, 32
        $region48: #{a_call__.1} parent=35 // pred_fallthru
          _
        // Predicated region
        $region49: #{a_call__.1} parent=35 // pred_check
          %p2023 = pneg %p181
        $region50: #{a_call__.1} parent=35 // pred_check_branch
          %2025 = sbr.rel (%p2023) target = $region52
        $region51: #{a_call__.1} parent=35 // pred_region
          %p2026 = scmp.lt.s32.totalorder %s27, 1
          %s2027 = scalar_select %p2026, %s27, 1
          %s2028 = smul.u32 8, %s2027
          %s2029 = ssub.s32 15, %s2028
          %p2030 = scmp.lt.s32.totalorder %s2029, 8
          %s2031 = scalar_select %p2030, %s2029, 8
          %s2032 = smul.u32 128, %s2031
          %s2033 = smul.u32 %s2032, 4
          %s2035 = ssub.s32 4096, %s2033
          %2036 = vsyncadd %s2000, %s2035
          %p2037 = scmp.ne.s32.totalorder 0, %s2033
          %s2038 = smul.addr %s2028, 4
          %s2039 = smul.addr %s2038, 128
          %s2040 = scalar_lea.hbm %s5, %s2039
          %s2041 = smul.u32 32, %s2031
          %s2042 = sshll.u32 %s2003, 4
          %s2043 = int_to_ptr.vmem [resolvable:$true] %s2042
          %s2044 = sshll.u32 %s2041, 4
          %2048 = dma.vmem_to_hbm [thread:$0]  (%p2037), %s2043, %s2044, %s2040, %s2000, 512, 512, 32
        $region52: #{a_call__.1} parent=35 // pred_fallthru
          _
      $region36: #{a_call__.1} parent=5 // pred_fallthru
        _
      %p2049 = scmp.le.s32.totalorder 2, %s22
      // Predicated region
      $region53: #{a_call__.1} parent=5 // pred_check
        %p2050 = pneg %p2049
      $region54: #{a_call__.1} parent=5 // pred_check_branch
        %2052 = sbr.rel (%p2050) target = $region56
      $region55: #{a_call__.1} parent=5 // pred_region
        %s2053 = ssub.s32 %s22, 2
        // Predicated region
        $region57: #{a_call__.1} parent=55 // pred_check
          %p2054 = pneg %p157
        $region58: #{a_call__.1} parent=55 // pred_check_branch
          %2056 = sbr.rel (%p2054) target = $region60
        $region59: #{a_call__.1} parent=55 // pred_region
          %s2057 = sand.u32 %s142, 1
          %s2058 = scalar_lea.sflag [#allocation4], %s2057
          %s2059 = sand.u32 %s142, 1
          %s2060 = smul.addr %s2059, 608
          %s2061 = scalar_lea.vmem [#allocation7], %s2060
          %2062 = dma.done %s2058, 9728
        $region60: #{a_call__.1} parent=55 // pred_fallthru
          _
        // Predicated region
        $region61: #{a_call__.1} parent=55 // pred_check
          %p2063 = pneg %p187
        $region62: #{a_call__.1} parent=55 // pred_check_branch
          %2065 = sbr.rel (%p2063) target = $region64
        $region63: #{a_call__.1} parent=55 // pred_region
          %s2066 = sand.u32 %s172, 1
          %s2067 = scalar_lea.sflag [#allocation9], %s2066
          %s2068 = sand.u32 %s172, 1
          %s2069 = smul.addr %s2068, 256
          %s2070 = scalar_lea.vmem [#allocation8], %s2069
          %2071 = dma.done %s2067, 4096
        $region64: #{a_call__.1} parent=55 // pred_fallthru
          _
      $region56: #{a_call__.1} parent=5 // pred_fallthru
        _
    $region6: #{a_call__.1} parent=1 // loop_footer
      %s26 = sadd.s32 1, %s22
    $region7: #{a_call__.1} parent=1 // loop_footer_branch
      %21 = sbr.rel target = $region3
    $region8: #{a_call__.1} parent=1 // loop_exit
      _
    %2072 = vsyncpa [#allocation3], 1
    %s2073 = scalar_lea.sflag [#allocation3], 1
    %2074 = vsyncpa %s2073, 1
    %2075 = vsyncpa [#allocation6], 1
    %2076 = vsyncpa [#allocation4], 1
    %s2077 = scalar_lea.sflag [#allocation4], 1
    %2078 = vsyncpa %s2077, 1
    %2079 = vsyncpa [#allocation9], 1
    %s2080 = scalar_lea.sflag [#allocation9], 1
    %2081 = vsyncpa %s2080, 1

</llo_original>
